<compile_context>
chip_gen: v6e
topology: v6e:2x2x1
jax: 0.10.0
libtpu: 0.0.40
codegen_flags: <defaults>
</compile_context>

<pallas_src>
import functools
import math

import jax
import jax.numpy as jnp
import numpy as np
from jax import lax
from jax.experimental import pallas as pl
from jax.experimental.pallas import tpu as pltpu


def _floor_ceil(n):
    return (math.floor(n), math.ceil(n))


def _pad16_conv_kernel(x_ref, w_ref, b_ref, o_ref, pbuf, *, H, W, C, hp0, wp0):
    """One batch element per grid step.

    Layout: channels on a small leading loop axis, H on sublanes, W on lanes.

    x_ref : (1, C, H, W)      original (uncropped) input tile, NCHW
    w_ref : (C*C*3*3,)        conv weights, flattened OIHW row-major, SMEM
    b_ref : (C,)              conv bias, SMEM
    o_ref : (1, C, H, W)      output tile (already cropped), NCHW
    pbuf  : (C, Hm+2, Wm+2)   VMEM scratch: pad16 zeros + conv 'same' halo
    """
    HP = pbuf.shape[1]
    WP = pbuf.shape[2]
    r0, r1 = 1 + hp0, 1 + hp0 + H          # interior rows in pbuf
    c0, c1 = 1 + wp0, 1 + wp0 + W          # interior cols in pbuf

    # Zero ONLY the border (pad16 zeros + 1-pixel conv halo).  The interior is
    # fully overwritten below.  Done every step so it stays correct when the
    # batch grid axis is split across TensorCores (no program_id==0 reliance).
    pbuf[:, 0:r0, :] = jnp.zeros((C, r0, WP), jnp.float32)
    pbuf[:, r1:HP, :] = jnp.zeros((C, HP - r1, WP), jnp.float32)
    pbuf[:, r0:r1, 0:c0] = jnp.zeros((C, H, c0), jnp.float32)
    pbuf[:, r0:r1, c1:WP] = jnp.zeros((C, H, WP - c1), jnp.float32)

    # Place x into the interior of the padded buffer.
    pbuf[:, r0:r1, c0:c1] = x_ref[0].astype(jnp.float32)

    # f32 accumulators, one (H, W) slab per output channel, seeded with bias.
    # (For large H-strips these should move to VMEM scratch to bound vreg
    #  pressure; at these sizes they are a handful of vregs.)
    accs = [jnp.full((H, W), b_ref[co], jnp.float32) for co in range(C)]

    # 3x3 conv evaluated only at the cropped window: load each shifted tap
    # once per input channel and feed every output-channel accumulator with a
    # scalar (SMEM) weight on the VPU.  C is tiny, so no MXU routing.
    for ci in range(C):
        for di in range(3):
            for dj in range(3):
                tap = pbuf[ci, hp0 + di:hp0 + di + H,
                           wp0 + dj:wp0 + dj + W]          # (H, W) f32
                for co in range(C):
                    w = w_ref[((co * C + ci) * 3 + di) * 3 + dj]
                    accs[co] = accs[co] + w * tap

    for co in range(C):
        o_ref[0, co, :, :] = accs[co].astype(o_ref.dtype)


def pad16_conv(x_nchw, weight_oihw, bias):
    """pad16(x) -> Conv2d(C,C,3,padding=1) -> crop, for NCHW input."""
    B, C, H, W = x_nchw.shape
    w_mult = ((W - 1) | 15) + 1
    h_mult = ((H - 1) | 15) + 1
    wp0, _wp1 = _floor_ceil((w_mult - W) / 2)
    hp0, _hp1 = _floor_ceil((h_mult - H) / 2)

    # Glue (layout plumbing only): weights/bias flattened for SMEM scalars.
    w_flat = weight_oihw.astype(jnp.float32).reshape(-1)   # OIHW row-major
    b_flat = bias.astype(jnp.float32).reshape(-1)

    kernel = functools.partial(_pad16_conv_kernel,
                               H=H, W=W, C=C, hp0=hp0, wp0=wp0)

    out = pl.pallas_call(
        kernel,
        out_shape=jax.ShapeDtypeStruct((B, C, H, W), x_nchw.dtype),
        grid_spec=pltpu.PrefetchScalarGridSpec(
            num_scalar_prefetch=0,
            grid=(B,),
            in_specs=[
                pl.BlockSpec((1, C, H, W), lambda b: (b, 0, 0, 0)),
                pl.BlockSpec(memory_space=pltpu.MemorySpace.SMEM),
                pl.BlockSpec(memory_space=pltpu.MemorySpace.SMEM),
            ],
            out_specs=pl.BlockSpec((1, C, H, W), lambda b: (b, 0, 0, 0)),
            scratch_shapes=[
                pltpu.VMEM((C, h_mult + 2, w_mult + 2), jnp.float32),
            ],
        ),
        compiler_params=pltpu.CompilerParams(
            dimension_semantics=("parallel",)),
    )(x_nchw, w_flat, b_flat)

    return out  # already NCHW


def _reference(x_nchw, weight_oihw, bias):
    """Pure-JAX replica of pad16(x, Conv2d(...)) for verification."""
    B, C, H, W = x_nchw.shape
    w_mult = ((W - 1) | 15) + 1
    h_mult = ((H - 1) | 15) + 1
    wp0, wp1 = _floor_ceil((w_mult - W) / 2)
    hp0, hp1 = _floor_ceil((h_mult - H) / 2)
    xp = jnp.pad(x_nchw, ((0, 0), (0, 0), (hp0, hp1), (wp0, wp1)))
    y = lax.conv_general_dilated(
        xp, weight_oihw, window_strides=(1, 1), padding=((1, 1), (1, 1)),
        dimension_numbers=('NCHW', 'OIHW', 'NCHW'))
    y = y + bias[None, :, None, None]
    return y[..., hp0:h_mult - hp1, wp0:w_mult - wp1]


if __name__ == "__main__":
    key = jax.random.PRNGKey(0)
    kx, kw, kb = jax.random.split(key, 3)

    B, C, H, W = 2, 4, 10, 12  # non-multiples of 16 so pad16 is non-trivial
    x = jax.random.normal(kx, (B, C, H, W), dtype=jnp.float32)

    # Deterministic "model" parameters: Conv2d(C, C, 3, padding=1, bias=True)
    fan_in = C * 3 * 3
    bound = 1.0 / math.sqrt(fan_in)
    weight = jax.random.uniform(kw, (C, C, 3, 3), jnp.float32, -bound, bound)
    bias = jax.random.uniform(kb, (C,), jnp.float32, -bound, bound)

    out = pad16_conv(x, weight, bias)
    out = jax.block_until_ready(out)

    ref = jax.block_until_ready(_reference(x, weight, bias))
    assert out.shape == (B, C, H, W)
    np.testing.assert_allclose(np.asarray(out), np.asarray(ref),
                               rtol=1e-5, atol=1e-5)
    print("KERNEL_OK")
</pallas_src>

<mosaic_0001>
module attributes {stable_mosaic.version = 11 : i64} {
  func.func @_pad16_conv_kernel(%arg0: i32, %arg1: memref<1x4x10x12xf32, #tpu.memory_space<vmem>>, %arg2: memref<144xf32, #tpu.memory_space<smem>>, %arg3: memref<4xf32, #tpu.memory_space<smem>>, %arg4: memref<1x4x10x12xf32, #tpu.memory_space<vmem>>, %arg5: memref<4x18x18xf32, #tpu.memory_space<vmem>>) attributes {dimension_semantics = [#tpu.dimension_semantics<parallel>], iteration_bounds = array<i64: 2>, scalar_prefetch = 0 : i64, scratch_operands = 1 : i64, tpu.core_type = #tpu.core_type<tc>, window_params = [{transform_indices = @transform_0, window_bounds = array<i64: 1, 4, 10, 12>}, {transform_indices = @transform_1, window_bounds = array<i64: 144>}, {transform_indices = @transform_2, window_bounds = array<i64: 4>}, {transform_indices = @transform_3, window_bounds = array<i64: 1, 4, 10, 12>}]} {
    %cst = arith.constant 0.000000e+00 : f32
    %0 = vector.broadcast %cst : f32 to vector<4x4x18xf32>
    %c0 = arith.constant 0 : index
    %c0_0 = arith.constant 0 : index
    %c0_1 = arith.constant 0 : index
    %1 = vector.load %arg5[%c0, %c0_0, %c0_1] : memref<4x18x18xf32, #tpu.memory_space<vmem>>, vector<4x4x18xf32>
    tpu.vector_store %arg5[%c0, %c0_0, %c0_1], %0 {strides = array<i32>} : memref<4x18x18xf32, #tpu.memory_space<vmem>>, vector<4x4x18xf32>,
    %cst_2 = arith.constant 0.000000e+00 : f32
    %2 = vector.broadcast %cst_2 : f32 to vector<4x4x18xf32>
    %c0_3 = arith.constant 0 : index
    %c14 = arith.constant 14 : index
    %c0_4 = arith.constant 0 : index
    %3 = vector.load %arg5[%c0_3, %c14, %c0_4] : memref<4x18x18xf32, #tpu.memory_space<vmem>>, vector<4x4x18xf32>
    tpu.vector_store %arg5[%c0_3, %c14, %c0_4], %2 {strides = array<i32>} : memref<4x18x18xf32, #tpu.memory_space<vmem>>, vector<4x4x18xf32>,
    %cst_5 = arith.constant 0.000000e+00 : f32
    %4 = vector.broadcast %cst_5 : f32 to vector<4x10x3xf32>
    %c0_6 = arith.constant 0 : index
    %c4 = arith.constant 4 : index
    %c0_7 = arith.constant 0 : index
    %5 = vector.load %arg5[%c0_6, %c4, %c0_7] : memref<4x18x18xf32, #tpu.memory_space<vmem>>, vector<4x10x3xf32>
    tpu.vector_store %arg5[%c0_6, %c4, %c0_7], %4 {strides = array<i32>} : memref<4x18x18xf32, #tpu.memory_space<vmem>>, vector<4x10x3xf32>,
    %cst_8 = arith.constant 0.000000e+00 : f32
    %6 = vector.broadcast %cst_8 : f32 to vector<4x10x3xf32>
    %c0_9 = arith.constant 0 : index
    %c4_10 = arith.constant 4 : index
    %c15 = arith.constant 15 : index
    %7 = vector.load %arg5[%c0_9, %c4_10, %c15] : memref<4x18x18xf32, #tpu.memory_space<vmem>>, vector<4x10x3xf32>
    tpu.vector_store %arg5[%c0_9, %c4_10, %c15], %6 {strides = array<i32>} : memref<4x18x18xf32, #tpu.memory_space<vmem>>, vector<4x10x3xf32>,
    %c0_11 = arith.constant 0 : index
    %c0_12 = arith.constant 0 : index
    %c0_13 = arith.constant 0 : index
    %c0_14 = arith.constant 0 : index
    %8 = vector.load %arg1[%c0_11, %c0_12, %c0_13, %c0_14] : memref<1x4x10x12xf32, #tpu.memory_space<vmem>>, vector<1x4x10x12xf32>
    %9 = vector.shape_cast %8 : vector<1x4x10x12xf32> to vector<4x10x12xf32>
    %c0_15 = arith.constant 0 : index
    %c4_16 = arith.constant 4 : index
    %c3 = arith.constant 3 : index
    %10 = vector.load %arg5[%c0_15, %c4_16, %c3] : memref<4x18x18xf32, #tpu.memory_space<vmem>>, vector<4x10x12xf32>
    tpu.vector_store %arg5[%c0_15, %c4_16, %c3], %9 {strides = array<i32>} : memref<4x18x18xf32, #tpu.memory_space<vmem>>, vector<4x10x12xf32>,
    %c0_17 = arith.constant 0 : index
    %11 = memref.load %arg3[%c0_17] : memref<4xf32, #tpu.memory_space<smem>>
    %12 = vector.broadcast %11 : f32 to vector<10x12xf32>
    %c1 = arith.constant 1 : index
    %13 = memref.load %arg3[%c1] : memref<4xf32, #tpu.memory_space<smem>>
    %14 = vector.broadcast %13 : f32 to vector<10x12xf32>
    %c2 = arith.constant 2 : index
    %15 = memref.load %arg3[%c2] : memref<4xf32, #tpu.memory_space<smem>>
    %16 = vector.broadcast %15 : f32 to vector<10x12xf32>
    %c3_18 = arith.constant 3 : index
    %17 = memref.load %arg3[%c3_18] : memref<4xf32, #tpu.memory_space<smem>>
    %18 = vector.broadcast %17 : f32 to vector<10x12xf32>
    %c0_19 = arith.constant 0 : index
    %c3_20 = arith.constant 3 : index
    %c2_21 = arith.constant 2 : index
    %19 = vector.load %arg5[%c0_19, %c3_20, %c2_21] : memref<4x18x18xf32, #tpu.memory_space<vmem>>, vector<1x10x12xf32>
    %20 = vector.shape_cast %19 : vector<1x10x12xf32> to vector<10x12xf32>
    %c0_22 = arith.constant 0 : index
    %21 = memref.load %arg2[%c0_22] : memref<144xf32, #tpu.memory_space<smem>>
    %22 = vector.broadcast %21 : f32 to vector<10x12xf32>
    %23 = arith.mulf %22, %20 : vector<10x12xf32>
    %24 = arith.addf %12, %23 : vector<10x12xf32>
    %c36 = arith.constant 36 : index
    %25 = memref.load %arg2[%c36] : memref<144xf32, #tpu.memory_space<smem>>
    %26 = vector.broadcast %25 : f32 to vector<10x12xf32>
    %27 = arith.mulf %26, %20 : vector<10x12xf32>
    %28 = arith.addf %14, %27 : vector<10x12xf32>
    %c72 = arith.constant 72 : index
    %29 = memref.load %arg2[%c72] : memref<144xf32, #tpu.memory_space<smem>>
    %30 = vector.broadcast %29 : f32 to vector<10x12xf32>
    %31 = arith.mulf %30, %20 : vector<10x12xf32>
    %32 = arith.addf %16, %31 : vector<10x12xf32>
    %c108 = arith.constant 108 : index
    %33 = memref.load %arg2[%c108] : memref<144xf32, #tpu.memory_space<smem>>
    %34 = vector.broadcast %33 : f32 to vector<10x12xf32>
    %35 = arith.mulf %34, %20 : vector<10x12xf32>
    %36 = arith.addf %18, %35 : vector<10x12xf32>
    %c0_23 = arith.constant 0 : index
    %c3_24 = arith.constant 3 : index
    %c3_25 = arith.constant 3 : index
    %37 = vector.load %arg5[%c0_23, %c3_24, %c3_25] : memref<4x18x18xf32, #tpu.memory_space<vmem>>, vector<1x10x12xf32>
    %38 = vector.shape_cast %37 : vector<1x10x12xf32> to vector<10x12xf32>
    %c1_26 = arith.constant 1 : index
    %39 = memref.load %arg2[%c1_26] : memref<144xf32, #tpu.memory_space<smem>>
    %40 = vector.broadcast %39 : f32 to vector<10x12xf32>
    %41 = arith.mulf %40, %38 : vector<10x12xf32>
    %42 = arith.addf %24, %41 : vector<10x12xf32>
    %c37 = arith.constant 37 : index
    %43 = memref.load %arg2[%c37] : memref<144xf32, #tpu.memory_space<smem>>
    %44 = vector.broadcast %43 : f32 to vector<10x12xf32>
    %45 = arith.mulf %44, %38 : vector<10x12xf32>
    %46 = arith.addf %28, %45 : vector<10x12xf32>
    %c73 = arith.constant 73 : index
    %47 = memref.load %arg2[%c73] : memref<144xf32, #tpu.memory_space<smem>>
    %48 = vector.broadcast %47 : f32 to vector<10x12xf32>
    %49 = arith.mulf %48, %38 : vector<10x12xf32>
    %50 = arith.addf %32, %49 : vector<10x12xf32>
    %c109 = arith.constant 109 : index
    %51 = memref.load %arg2[%c109] : memref<144xf32, #tpu.memory_space<smem>>
    %52 = vector.broadcast %51 : f32 to vector<10x12xf32>
    %53 = arith.mulf %52, %38 : vector<10x12xf32>
    %54 = arith.addf %36, %53 : vector<10x12xf32>
    %c0_27 = arith.constant 0 : index
    %c3_28 = arith.constant 3 : index
    %c4_29 = arith.constant 4 : index
    %55 = vector.load %arg5[%c0_27, %c3_28, %c4_29] : memref<4x18x18xf32, #tpu.memory_space<vmem>>, vector<1x10x12xf32>
    %56 = vector.shape_cast %55 : vector<1x10x12xf32> to vector<10x12xf32>
    %c2_30 = arith.constant 2 : index
    %57 = memref.load %arg2[%c2_30] : memref<144xf32, #tpu.memory_space<smem>>
    %58 = vector.broadcast %57 : f32 to vector<10x12xf32>
    %59 = arith.mulf %58, %56 : vector<10x12xf32>
    %60 = arith.addf %42, %59 : vector<10x12xf32>
    %c38 = arith.constant 38 : index
    %61 = memref.load %arg2[%c38] : memref<144xf32, #tpu.memory_space<smem>>
    %62 = vector.broadcast %61 : f32 to vector<10x12xf32>
    %63 = arith.mulf %62, %56 : vector<10x12xf32>
    %64 = arith.addf %46, %63 : vector<10x12xf32>
    %c74 = arith.constant 74 : index
    %65 = memref.load %arg2[%c74] : memref<144xf32, #tpu.memory_space<smem>>
    %66 = vector.broadcast %65 : f32 to vector<10x12xf32>
    %67 = arith.mulf %66, %56 : vector<10x12xf32>
    %68 = arith.addf %50, %67 : vector<10x12xf32>
    %c110 = arith.constant 110 : index
    %69 = memref.load %arg2[%c110] : memref<144xf32, #tpu.memory_space<smem>>
    %70 = vector.broadcast %69 : f32 to vector<10x12xf32>
    %71 = arith.mulf %70, %56 : vector<10x12xf32>
    %72 = arith.addf %54, %71 : vector<10x12xf32>
    %c0_31 = arith.constant 0 : index
    %c4_32 = arith.constant 4 : index
    %c2_33 = arith.constant 2 : index
    %73 = vector.load %arg5[%c0_31, %c4_32, %c2_33] : memref<4x18x18xf32, #tpu.memory_space<vmem>>, vector<1x10x12xf32>
    %74 = vector.shape_cast %73 : vector<1x10x12xf32> to vector<10x12xf32>
    %c3_34 = arith.constant 3 : index
    %75 = memref.load %arg2[%c3_34] : memref<144xf32, #tpu.memory_space<smem>>
    %76 = vector.broadcast %75 : f32 to vector<10x12xf32>
    %77 = arith.mulf %76, %74 : vector<10x12xf32>
    %78 = arith.addf %60, %77 : vector<10x12xf32>
    %c39 = arith.constant 39 : index
    %79 = memref.load %arg2[%c39] : memref<144xf32, #tpu.memory_space<smem>>
    %80 = vector.broadcast %79 : f32 to vector<10x12xf32>
    %81 = arith.mulf %80, %74 : vector<10x12xf32>
    %82 = arith.addf %64, %81 : vector<10x12xf32>
    %c75 = arith.constant 75 : index
    %83 = memref.load %arg2[%c75] : memref<144xf32, #tpu.memory_space<smem>>
    %84 = vector.broadcast %83 : f32 to vector<10x12xf32>
    %85 = arith.mulf %84, %74 : vector<10x12xf32>
    %86 = arith.addf %68, %85 : vector<10x12xf32>
    %c111 = arith.constant 111 : index
    %87 = memref.load %arg2[%c111] : memref<144xf32, #tpu.memory_space<smem>>
    %88 = vector.broadcast %87 : f32 to vector<10x12xf32>
    %89 = arith.mulf %88, %74 : vector<10x12xf32>
    %90 = arith.addf %72, %89 : vector<10x12xf32>
    %c0_35 = arith.constant 0 : index
    %c4_36 = arith.constant 4 : index
    %c3_37 = arith.constant 3 : index
    %91 = vector.load %arg5[%c0_35, %c4_36, %c3_37] : memref<4x18x18xf32, #tpu.memory_space<vmem>>, vector<1x10x12xf32>
    %92 = vector.shape_cast %91 : vector<1x10x12xf32> to vector<10x12xf32>
    %c4_38 = arith.constant 4 : index
    %93 = memref.load %arg2[%c4_38] : memref<144xf32, #tpu.memory_space<smem>>
    %94 = vector.broadcast %93 : f32 to vector<10x12xf32>
    %95 = arith.mulf %94, %92 : vector<10x12xf32>
    %96 = arith.addf %78, %95 : vector<10x12xf32>
    %c40 = arith.constant 40 : index
    %97 = memref.load %arg2[%c40] : memref<144xf32, #tpu.memory_space<smem>>
    %98 = vector.broadcast %97 : f32 to vector<10x12xf32>
    %99 = arith.mulf %98, %92 : vector<10x12xf32>
    %100 = arith.addf %82, %99 : vector<10x12xf32>
    %c76 = arith.constant 76 : index
    %101 = memref.load %arg2[%c76] : memref<144xf32, #tpu.memory_space<smem>>
    %102 = vector.broadcast %101 : f32 to vector<10x12xf32>
    %103 = arith.mulf %102, %92 : vector<10x12xf32>
    %104 = arith.addf %86, %103 : vector<10x12xf32>
    %c112 = arith.constant 112 : index
    %105 = memref.load %arg2[%c112] : memref<144xf32, #tpu.memory_space<smem>>
    %106 = vector.broadcast %105 : f32 to vector<10x12xf32>
    %107 = arith.mulf %106, %92 : vector<10x12xf32>
    %108 = arith.addf %90, %107 : vector<10x12xf32>
    %c0_39 = arith.constant 0 : index
    %c4_40 = arith.constant 4 : index
    %c4_41 = arith.constant 4 : index
    %109 = vector.load %arg5[%c0_39, %c4_40, %c4_41] : memref<4x18x18xf32, #tpu.memory_space<vmem>>, vector<1x10x12xf32>
    %110 = vector.shape_cast %109 : vector<1x10x12xf32> to vector<10x12xf32>
    %c5 = arith.constant 5 : index
    %111 = memref.load %arg2[%c5] : memref<144xf32, #tpu.memory_space<smem>>
    %112 = vector.broadcast %111 : f32 to vector<10x12xf32>
    %113 = arith.mulf %112, %110 : vector<10x12xf32>
    %114 = arith.addf %96, %113 : vector<10x12xf32>
    %c41 = arith.constant 41 : index
    %115 = memref.load %arg2[%c41] : memref<144xf32, #tpu.memory_space<smem>>
    %116 = vector.broadcast %115 : f32 to vector<10x12xf32>
    %117 = arith.mulf %116, %110 : vector<10x12xf32>
    %118 = arith.addf %100, %117 : vector<10x12xf32>
    %c77 = arith.constant 77 : index
    %119 = memref.load %arg2[%c77] : memref<144xf32, #tpu.memory_space<smem>>
    %120 = vector.broadcast %119 : f32 to vector<10x12xf32>
    %121 = arith.mulf %120, %110 : vector<10x12xf32>
    %122 = arith.addf %104, %121 : vector<10x12xf32>
    %c113 = arith.constant 113 : index
    %123 = memref.load %arg2[%c113] : memref<144xf32, #tpu.memory_space<smem>>
    %124 = vector.broadcast %123 : f32 to vector<10x12xf32>
    %125 = arith.mulf %124, %110 : vector<10x12xf32>
    %126 = arith.addf %108, %125 : vector<10x12xf32>
    %c0_42 = arith.constant 0 : index
    %c5_43 = arith.constant 5 : index
    %c2_44 = arith.constant 2 : index
    %127 = vector.load %arg5[%c0_42, %c5_43, %c2_44] : memref<4x18x18xf32, #tpu.memory_space<vmem>>, vector<1x10x12xf32>
    %128 = vector.shape_cast %127 : vector<1x10x12xf32> to vector<10x12xf32>
    %c6 = arith.constant 6 : index
    %129 = memref.load %arg2[%c6] : memref<144xf32, #tpu.memory_space<smem>>
    %130 = vector.broadcast %129 : f32 to vector<10x12xf32>
    %131 = arith.mulf %130, %128 : vector<10x12xf32>
    %132 = arith.addf %114, %131 : vector<10x12xf32>
    %c42 = arith.constant 42 : index
    %133 = memref.load %arg2[%c42] : memref<144xf32, #tpu.memory_space<smem>>
    %134 = vector.broadcast %133 : f32 to vector<10x12xf32>
    %135 = arith.mulf %134, %128 : vector<10x12xf32>
    %136 = arith.addf %118, %135 : vector<10x12xf32>
    %c78 = arith.constant 78 : index
    %137 = memref.load %arg2[%c78] : memref<144xf32, #tpu.memory_space<smem>>
    %138 = vector.broadcast %137 : f32 to vector<10x12xf32>
    %139 = arith.mulf %138, %128 : vector<10x12xf32>
    %140 = arith.addf %122, %139 : vector<10x12xf32>
    %c114 = arith.constant 114 : index
    %141 = memref.load %arg2[%c114] : memref<144xf32, #tpu.memory_space<smem>>
    %142 = vector.broadcast %141 : f32 to vector<10x12xf32>
    %143 = arith.mulf %142, %128 : vector<10x12xf32>
    %144 = arith.addf %126, %143 : vector<10x12xf32>
    %c0_45 = arith.constant 0 : index
    %c5_46 = arith.constant 5 : index
    %c3_47 = arith.constant 3 : index
    %145 = vector.load %arg5[%c0_45, %c5_46, %c3_47] : memref<4x18x18xf32, #tpu.memory_space<vmem>>, vector<1x10x12xf32>
    %146 = vector.shape_cast %145 : vector<1x10x12xf32> to vector<10x12xf32>
    %c7 = arith.constant 7 : index
    %147 = memref.load %arg2[%c7] : memref<144xf32, #tpu.memory_space<smem>>
    %148 = vector.broadcast %147 : f32 to vector<10x12xf32>
    %149 = arith.mulf %148, %146 : vector<10x12xf32>
    %150 = arith.addf %132, %149 : vector<10x12xf32>
    %c43 = arith.constant 43 : index
    %151 = memref.load %arg2[%c43] : memref<144xf32, #tpu.memory_space<smem>>
    %152 = vector.broadcast %151 : f32 to vector<10x12xf32>
    %153 = arith.mulf %152, %146 : vector<10x12xf32>
    %154 = arith.addf %136, %153 : vector<10x12xf32>
    %c79 = arith.constant 79 : index
    %155 = memref.load %arg2[%c79] : memref<144xf32, #tpu.memory_space<smem>>
    %156 = vector.broadcast %155 : f32 to vector<10x12xf32>
    %157 = arith.mulf %156, %146 : vector<10x12xf32>
    %158 = arith.addf %140, %157 : vector<10x12xf32>
    %c115 = arith.constant 115 : index
    %159 = memref.load %arg2[%c115] : memref<144xf32, #tpu.memory_space<smem>>
    %160 = vector.broadcast %159 : f32 to vector<10x12xf32>
    %161 = arith.mulf %160, %146 : vector<10x12xf32>
    %162 = arith.addf %144, %161 : vector<10x12xf32>
    %c0_48 = arith.constant 0 : index
    %c5_49 = arith.constant 5 : index
    %c4_50 = arith.constant 4 : index
    %163 = vector.load %arg5[%c0_48, %c5_49, %c4_50] : memref<4x18x18xf32, #tpu.memory_space<vmem>>, vector<1x10x12xf32>
    %164 = vector.shape_cast %163 : vector<1x10x12xf32> to vector<10x12xf32>
    %c8 = arith.constant 8 : index
    %165 = memref.load %arg2[%c8] : memref<144xf32, #tpu.memory_space<smem>>
    %166 = vector.broadcast %165 : f32 to vector<10x12xf32>
    %167 = arith.mulf %166, %164 : vector<10x12xf32>
    %168 = arith.addf %150, %167 : vector<10x12xf32>
    %c44 = arith.constant 44 : index
    %169 = memref.load %arg2[%c44] : memref<144xf32, #tpu.memory_space<smem>>
    %170 = vector.broadcast %169 : f32 to vector<10x12xf32>
    %171 = arith.mulf %170, %164 : vector<10x12xf32>
    %172 = arith.addf %154, %171 : vector<10x12xf32>
    %c80 = arith.constant 80 : index
    %173 = memref.load %arg2[%c80] : memref<144xf32, #tpu.memory_space<smem>>
    %174 = vector.broadcast %173 : f32 to vector<10x12xf32>
    %175 = arith.mulf %174, %164 : vector<10x12xf32>
    %176 = arith.addf %158, %175 : vector<10x12xf32>
    %c116 = arith.constant 116 : index
    %177 = memref.load %arg2[%c116] : memref<144xf32, #tpu.memory_space<smem>>
    %178 = vector.broadcast %177 : f32 to vector<10x12xf32>
    %179 = arith.mulf %178, %164 : vector<10x12xf32>
    %180 = arith.addf %162, %179 : vector<10x12xf32>
    %c1_51 = arith.constant 1 : index
    %c3_52 = arith.constant 3 : index
    %c2_53 = arith.constant 2 : index
    %181 = vector.load %arg5[%c1_51, %c3_52, %c2_53] : memref<4x18x18xf32, #tpu.memory_space<vmem>>, vector<1x10x12xf32>
    %182 = vector.shape_cast %181 : vector<1x10x12xf32> to vector<10x12xf32>
    %c9 = arith.constant 9 : index
    %183 = memref.load %arg2[%c9] : memref<144xf32, #tpu.memory_space<smem>>
    %184 = vector.broadcast %183 : f32 to vector<10x12xf32>
    %185 = arith.mulf %184, %182 : vector<10x12xf32>
    %186 = arith.addf %168, %185 : vector<10x12xf32>
    %c45 = arith.constant 45 : index
    %187 = memref.load %arg2[%c45] : memref<144xf32, #tpu.memory_space<smem>>
    %188 = vector.broadcast %187 : f32 to vector<10x12xf32>
    %189 = arith.mulf %188, %182 : vector<10x12xf32>
    %190 = arith.addf %172, %189 : vector<10x12xf32>
    %c81 = arith.constant 81 : index
    %191 = memref.load %arg2[%c81] : memref<144xf32, #tpu.memory_space<smem>>
    %192 = vector.broadcast %191 : f32 to vector<10x12xf32>
    %193 = arith.mulf %192, %182 : vector<10x12xf32>
    %194 = arith.addf %176, %193 : vector<10x12xf32>
    %c117 = arith.constant 117 : index
    %195 = memref.load %arg2[%c117] : memref<144xf32, #tpu.memory_space<smem>>
    %196 = vector.broadcast %195 : f32 to vector<10x12xf32>
    %197 = arith.mulf %196, %182 : vector<10x12xf32>
    %198 = arith.addf %180, %197 : vector<10x12xf32>
    %c1_54 = arith.constant 1 : index
    %c3_55 = arith.constant 3 : index
    %c3_56 = arith.constant 3 : index
    %199 = vector.load %arg5[%c1_54, %c3_55, %c3_56] : memref<4x18x18xf32, #tpu.memory_space<vmem>>, vector<1x10x12xf32>
    %200 = vector.shape_cast %199 : vector<1x10x12xf32> to vector<10x12xf32>
    %c10 = arith.constant 10 : index
    %201 = memref.load %arg2[%c10] : memref<144xf32, #tpu.memory_space<smem>>
    %202 = vector.broadcast %201 : f32 to vector<10x12xf32>
    %203 = arith.mulf %202, %200 : vector<10x12xf32>
    %204 = arith.addf %186, %203 : vector<10x12xf32>
    %c46 = arith.constant 46 : index
    %205 = memref.load %arg2[%c46] : memref<144xf32, #tpu.memory_space<smem>>
    %206 = vector.broadcast %205 : f32 to vector<10x12xf32>
    %207 = arith.mulf %206, %200 : vector<10x12xf32>
    %208 = arith.addf %190, %207 : vector<10x12xf32>
    %c82 = arith.constant 82 : index
    %209 = memref.load %arg2[%c82] : memref<144xf32, #tpu.memory_space<smem>>
    %210 = vector.broadcast %209 : f32 to vector<10x12xf32>
    %211 = arith.mulf %210, %200 : vector<10x12xf32>
    %212 = arith.addf %194, %211 : vector<10x12xf32>
    %c118 = arith.constant 118 : index
    %213 = memref.load %arg2[%c118] : memref<144xf32, #tpu.memory_space<smem>>
    %214 = vector.broadcast %213 : f32 to vector<10x12xf32>
    %215 = arith.mulf %214, %200 : vector<10x12xf32>
    %216 = arith.addf %198, %215 : vector<10x12xf32>
    %c1_57 = arith.constant 1 : index
    %c3_58 = arith.constant 3 : index
    %c4_59 = arith.constant 4 : index
    %217 = vector.load %arg5[%c1_57, %c3_58, %c4_59] : memref<4x18x18xf32, #tpu.memory_space<vmem>>, vector<1x10x12xf32>
    %218 = vector.shape_cast %217 : vector<1x10x12xf32> to vector<10x12xf32>
    %c11 = arith.constant 11 : index
    %219 = memref.load %arg2[%c11] : memref<144xf32, #tpu.memory_space<smem>>
    %220 = vector.broadcast %219 : f32 to vector<10x12xf32>
    %221 = arith.mulf %220, %218 : vector<10x12xf32>
    %222 = arith.addf %204, %221 : vector<10x12xf32>
    %c47 = arith.constant 47 : index
    %223 = memref.load %arg2[%c47] : memref<144xf32, #tpu.memory_space<smem>>
    %224 = vector.broadcast %223 : f32 to vector<10x12xf32>
    %225 = arith.mulf %224, %218 : vector<10x12xf32>
    %226 = arith.addf %208, %225 : vector<10x12xf32>
    %c83 = arith.constant 83 : index
    %227 = memref.load %arg2[%c83] : memref<144xf32, #tpu.memory_space<smem>>
    %228 = vector.broadcast %227 : f32 to vector<10x12xf32>
    %229 = arith.mulf %228, %218 : vector<10x12xf32>
    %230 = arith.addf %212, %229 : vector<10x12xf32>
    %c119 = arith.constant 119 : index
    %231 = memref.load %arg2[%c119] : memref<144xf32, #tpu.memory_space<smem>>
    %232 = vector.broadcast %231 : f32 to vector<10x12xf32>
    %233 = arith.mulf %232, %218 : vector<10x12xf32>
    %234 = arith.addf %216, %233 : vector<10x12xf32>
    %c1_60 = arith.constant 1 : index
    %c4_61 = arith.constant 4 : index
    %c2_62 = arith.constant 2 : index
    %235 = vector.load %arg5[%c1_60, %c4_61, %c2_62] : memref<4x18x18xf32, #tpu.memory_space<vmem>>, vector<1x10x12xf32>
    %236 = vector.shape_cast %235 : vector<1x10x12xf32> to vector<10x12xf32>
    %c12 = arith.constant 12 : index
    %237 = memref.load %arg2[%c12] : memref<144xf32, #tpu.memory_space<smem>>
    %238 = vector.broadcast %237 : f32 to vector<10x12xf32>
    %239 = arith.mulf %238, %236 : vector<10x12xf32>
    %240 = arith.addf %222, %239 : vector<10x12xf32>
    %c48 = arith.constant 48 : index
    %241 = memref.load %arg2[%c48] : memref<144xf32, #tpu.memory_space<smem>>
    %242 = vector.broadcast %241 : f32 to vector<10x12xf32>
    %243 = arith.mulf %242, %236 : vector<10x12xf32>
    %244 = arith.addf %226, %243 : vector<10x12xf32>
    %c84 = arith.constant 84 : index
    %245 = memref.load %arg2[%c84] : memref<144xf32, #tpu.memory_space<smem>>
    %246 = vector.broadcast %245 : f32 to vector<10x12xf32>
    %247 = arith.mulf %246, %236 : vector<10x12xf32>
    %248 = arith.addf %230, %247 : vector<10x12xf32>
    %c120 = arith.constant 120 : index
    %249 = memref.load %arg2[%c120] : memref<144xf32, #tpu.memory_space<smem>>
    %250 = vector.broadcast %249 : f32 to vector<10x12xf32>
    %251 = arith.mulf %250, %236 : vector<10x12xf32>
    %252 = arith.addf %234, %251 : vector<10x12xf32>
    %c1_63 = arith.constant 1 : index
    %c4_64 = arith.constant 4 : index
    %c3_65 = arith.constant 3 : index
    %253 = vector.load %arg5[%c1_63, %c4_64, %c3_65] : memref<4x18x18xf32, #tpu.memory_space<vmem>>, vector<1x10x12xf32>
    %254 = vector.shape_cast %253 : vector<1x10x12xf32> to vector<10x12xf32>
    %c13 = arith.constant 13 : index
    %255 = memref.load %arg2[%c13] : memref<144xf32, #tpu.memory_space<smem>>
    %256 = vector.broadcast %255 : f32 to vector<10x12xf32>
    %257 = arith.mulf %256, %254 : vector<10x12xf32>
    %258 = arith.addf %240, %257 : vector<10x12xf32>
    %c49 = arith.constant 49 : index
    %259 = memref.load %arg2[%c49] : memref<144xf32, #tpu.memory_space<smem>>
    %260 = vector.broadcast %259 : f32 to vector<10x12xf32>
    %261 = arith.mulf %260, %254 : vector<10x12xf32>
    %262 = arith.addf %244, %261 : vector<10x12xf32>
    %c85 = arith.constant 85 : index
    %263 = memref.load %arg2[%c85] : memref<144xf32, #tpu.memory_space<smem>>
    %264 = vector.broadcast %263 : f32 to vector<10x12xf32>
    %265 = arith.mulf %264, %254 : vector<10x12xf32>
    %266 = arith.addf %248, %265 : vector<10x12xf32>
    %c121 = arith.constant 121 : index
    %267 = memref.load %arg2[%c121] : memref<144xf32, #tpu.memory_space<smem>>
    %268 = vector.broadcast %267 : f32 to vector<10x12xf32>
    %269 = arith.mulf %268, %254 : vector<10x12xf32>
    %270 = arith.addf %252, %269 : vector<10x12xf32>
    %c1_66 = arith.constant 1 : index
    %c4_67 = arith.constant 4 : index
    %c4_68 = arith.constant 4 : index
    %271 = vector.load %arg5[%c1_66, %c4_67, %c4_68] : memref<4x18x18xf32, #tpu.memory_space<vmem>>, vector<1x10x12xf32>
    %272 = vector.shape_cast %271 : vector<1x10x12xf32> to vector<10x12xf32>
    %c14_69 = arith.constant 14 : index
    %273 = memref.load %arg2[%c14_69] : memref<144xf32, #tpu.memory_space<smem>>
    %274 = vector.broadcast %273 : f32 to vector<10x12xf32>
    %275 = arith.mulf %274, %272 : vector<10x12xf32>
    %276 = arith.addf %258, %275 : vector<10x12xf32>
    %c50 = arith.constant 50 : index
    %277 = memref.load %arg2[%c50] : memref<144xf32, #tpu.memory_space<smem>>
    %278 = vector.broadcast %277 : f32 to vector<10x12xf32>
    %279 = arith.mulf %278, %272 : vector<10x12xf32>
    %280 = arith.addf %262, %279 : vector<10x12xf32>
    %c86 = arith.constant 86 : index
    %281 = memref.load %arg2[%c86] : memref<144xf32, #tpu.memory_space<smem>>
    %282 = vector.broadcast %281 : f32 to vector<10x12xf32>
    %283 = arith.mulf %282, %272 : vector<10x12xf32>
    %284 = arith.addf %266, %283 : vector<10x12xf32>
    %c122 = arith.constant 122 : index
    %285 = memref.load %arg2[%c122] : memref<144xf32, #tpu.memory_space<smem>>
    %286 = vector.broadcast %285 : f32 to vector<10x12xf32>
    %287 = arith.mulf %286, %272 : vector<10x12xf32>
    %288 = arith.addf %270, %287 : vector<10x12xf32>
    %c1_70 = arith.constant 1 : index
    %c5_71 = arith.constant 5 : index
    %c2_72 = arith.constant 2 : index
    %289 = vector.load %arg5[%c1_70, %c5_71, %c2_72] : memref<4x18x18xf32, #tpu.memory_space<vmem>>, vector<1x10x12xf32>
    %290 = vector.shape_cast %289 : vector<1x10x12xf32> to vector<10x12xf32>
    %c15_73 = arith.constant 15 : index
    %291 = memref.load %arg2[%c15_73] : memref<144xf32, #tpu.memory_space<smem>>
    %292 = vector.broadcast %291 : f32 to vector<10x12xf32>
    %293 = arith.mulf %292, %290 : vector<10x12xf32>
    %294 = arith.addf %276, %293 : vector<10x12xf32>
    %c51 = arith.constant 51 : index
    %295 = memref.load %arg2[%c51] : memref<144xf32, #tpu.memory_space<smem>>
    %296 = vector.broadcast %295 : f32 to vector<10x12xf32>
    %297 = arith.mulf %296, %290 : vector<10x12xf32>
    %298 = arith.addf %280, %297 : vector<10x12xf32>
    %c87 = arith.constant 87 : index
    %299 = memref.load %arg2[%c87] : memref<144xf32, #tpu.memory_space<smem>>
    %300 = vector.broadcast %299 : f32 to vector<10x12xf32>
    %301 = arith.mulf %300, %290 : vector<10x12xf32>
    %302 = arith.addf %284, %301 : vector<10x12xf32>
    %c123 = arith.constant 123 : index
    %303 = memref.load %arg2[%c123] : memref<144xf32, #tpu.memory_space<smem>>
    %304 = vector.broadcast %303 : f32 to vector<10x12xf32>
    %305 = arith.mulf %304, %290 : vector<10x12xf32>
    %306 = arith.addf %288, %305 : vector<10x12xf32>
    %c1_74 = arith.constant 1 : index
    %c5_75 = arith.constant 5 : index
    %c3_76 = arith.constant 3 : index
    %307 = vector.load %arg5[%c1_74, %c5_75, %c3_76] : memref<4x18x18xf32, #tpu.memory_space<vmem>>, vector<1x10x12xf32>
    %308 = vector.shape_cast %307 : vector<1x10x12xf32> to vector<10x12xf32>
    %c16 = arith.constant 16 : index
    %309 = memref.load %arg2[%c16] : memref<144xf32, #tpu.memory_space<smem>>
    %310 = vector.broadcast %309 : f32 to vector<10x12xf32>
    %311 = arith.mulf %310, %308 : vector<10x12xf32>
    %312 = arith.addf %294, %311 : vector<10x12xf32>
    %c52 = arith.constant 52 : index
    %313 = memref.load %arg2[%c52] : memref<144xf32, #tpu.memory_space<smem>>
    %314 = vector.broadcast %313 : f32 to vector<10x12xf32>
    %315 = arith.mulf %314, %308 : vector<10x12xf32>
    %316 = arith.addf %298, %315 : vector<10x12xf32>
    %c88 = arith.constant 88 : index
    %317 = memref.load %arg2[%c88] : memref<144xf32, #tpu.memory_space<smem>>
    %318 = vector.broadcast %317 : f32 to vector<10x12xf32>
    %319 = arith.mulf %318, %308 : vector<10x12xf32>
    %320 = arith.addf %302, %319 : vector<10x12xf32>
    %c124 = arith.constant 124 : index
    %321 = memref.load %arg2[%c124] : memref<144xf32, #tpu.memory_space<smem>>
    %322 = vector.broadcast %321 : f32 to vector<10x12xf32>
    %323 = arith.mulf %322, %308 : vector<10x12xf32>
    %324 = arith.addf %306, %323 : vector<10x12xf32>
    %c1_77 = arith.constant 1 : index
    %c5_78 = arith.constant 5 : index
    %c4_79 = arith.constant 4 : index
    %325 = vector.load %arg5[%c1_77, %c5_78, %c4_79] : memref<4x18x18xf32, #tpu.memory_space<vmem>>, vector<1x10x12xf32>
    %326 = vector.shape_cast %325 : vector<1x10x12xf32> to vector<10x12xf32>
    %c17 = arith.constant 17 : index
    %327 = memref.load %arg2[%c17] : memref<144xf32, #tpu.memory_space<smem>>
    %328 = vector.broadcast %327 : f32 to vector<10x12xf32>
    %329 = arith.mulf %328, %326 : vector<10x12xf32>
    %330 = arith.addf %312, %329 : vector<10x12xf32>
    %c53 = arith.constant 53 : index
    %331 = memref.load %arg2[%c53] : memref<144xf32, #tpu.memory_space<smem>>
    %332 = vector.broadcast %331 : f32 to vector<10x12xf32>
    %333 = arith.mulf %332, %326 : vector<10x12xf32>
    %334 = arith.addf %316, %333 : vector<10x12xf32>
    %c89 = arith.constant 89 : index
    %335 = memref.load %arg2[%c89] : memref<144xf32, #tpu.memory_space<smem>>
    %336 = vector.broadcast %335 : f32 to vector<10x12xf32>
    %337 = arith.mulf %336, %326 : vector<10x12xf32>
    %338 = arith.addf %320, %337 : vector<10x12xf32>
    %c125 = arith.constant 125 : index
    %339 = memref.load %arg2[%c125] : memref<144xf32, #tpu.memory_space<smem>>
    %340 = vector.broadcast %339 : f32 to vector<10x12xf32>
    %341 = arith.mulf %340, %326 : vector<10x12xf32>
    %342 = arith.addf %324, %341 : vector<10x12xf32>
    %c2_80 = arith.constant 2 : index
    %c3_81 = arith.constant 3 : index
    %c2_82 = arith.constant 2 : index
    %343 = vector.load %arg5[%c2_80, %c3_81, %c2_82] : memref<4x18x18xf32, #tpu.memory_space<vmem>>, vector<1x10x12xf32>
    %344 = vector.shape_cast %343 : vector<1x10x12xf32> to vector<10x12xf32>
    %c18 = arith.constant 18 : index
    %345 = memref.load %arg2[%c18] : memref<144xf32, #tpu.memory_space<smem>>
    %346 = vector.broadcast %345 : f32 to vector<10x12xf32>
    %347 = arith.mulf %346, %344 : vector<10x12xf32>
    %348 = arith.addf %330, %347 : vector<10x12xf32>
    %c54 = arith.constant 54 : index
    %349 = memref.load %arg2[%c54] : memref<144xf32, #tpu.memory_space<smem>>
    %350 = vector.broadcast %349 : f32 to vector<10x12xf32>
    %351 = arith.mulf %350, %344 : vector<10x12xf32>
    %352 = arith.addf %334, %351 : vector<10x12xf32>
    %c90 = arith.constant 90 : index
    %353 = memref.load %arg2[%c90] : memref<144xf32, #tpu.memory_space<smem>>
    %354 = vector.broadcast %353 : f32 to vector<10x12xf32>
    %355 = arith.mulf %354, %344 : vector<10x12xf32>
    %356 = arith.addf %338, %355 : vector<10x12xf32>
    %c126 = arith.constant 126 : index
    %357 = memref.load %arg2[%c126] : memref<144xf32, #tpu.memory_space<smem>>
    %358 = vector.broadcast %357 : f32 to vector<10x12xf32>
    %359 = arith.mulf %358, %344 : vector<10x12xf32>
    %360 = arith.addf %342, %359 : vector<10x12xf32>
    %c2_83 = arith.constant 2 : index
    %c3_84 = arith.constant 3 : index
    %c3_85 = arith.constant 3 : index
    %361 = vector.load %arg5[%c2_83, %c3_84, %c3_85] : memref<4x18x18xf32, #tpu.memory_space<vmem>>, vector<1x10x12xf32>
    %362 = vector.shape_cast %361 : vector<1x10x12xf32> to vector<10x12xf32>
    %c19 = arith.constant 19 : index
    %363 = memref.load %arg2[%c19] : memref<144xf32, #tpu.memory_space<smem>>
    %364 = vector.broadcast %363 : f32 to vector<10x12xf32>
    %365 = arith.mulf %364, %362 : vector<10x12xf32>
    %366 = arith.addf %348, %365 : vector<10x12xf32>
    %c55 = arith.constant 55 : index
    %367 = memref.load %arg2[%c55] : memref<144xf32, #tpu.memory_space<smem>>
    %368 = vector.broadcast %367 : f32 to vector<10x12xf32>
    %369 = arith.mulf %368, %362 : vector<10x12xf32>
    %370 = arith.addf %352, %369 : vector<10x12xf32>
    %c91 = arith.constant 91 : index
    %371 = memref.load %arg2[%c91] : memref<144xf32, #tpu.memory_space<smem>>
    %372 = vector.broadcast %371 : f32 to vector<10x12xf32>
    %373 = arith.mulf %372, %362 : vector<10x12xf32>
    %374 = arith.addf %356, %373 : vector<10x12xf32>
    %c127 = arith.constant 127 : index
    %375 = memref.load %arg2[%c127] : memref<144xf32, #tpu.memory_space<smem>>
    %376 = vector.broadcast %375 : f32 to vector<10x12xf32>
    %377 = arith.mulf %376, %362 : vector<10x12xf32>
    %378 = arith.addf %360, %377 : vector<10x12xf32>
    %c2_86 = arith.constant 2 : index
    %c3_87 = arith.constant 3 : index
    %c4_88 = arith.constant 4 : index
    %379 = vector.load %arg5[%c2_86, %c3_87, %c4_88] : memref<4x18x18xf32, #tpu.memory_space<vmem>>, vector<1x10x12xf32>
    %380 = vector.shape_cast %379 : vector<1x10x12xf32> to vector<10x12xf32>
    %c20 = arith.constant 20 : index
    %381 = memref.load %arg2[%c20] : memref<144xf32, #tpu.memory_space<smem>>
    %382 = vector.broadcast %381 : f32 to vector<10x12xf32>
    %383 = arith.mulf %382, %380 : vector<10x12xf32>
    %384 = arith.addf %366, %383 : vector<10x12xf32>
    %c56 = arith.constant 56 : index
    %385 = memref.load %arg2[%c56] : memref<144xf32, #tpu.memory_space<smem>>
    %386 = vector.broadcast %385 : f32 to vector<10x12xf32>
    %387 = arith.mulf %386, %380 : vector<10x12xf32>
    %388 = arith.addf %370, %387 : vector<10x12xf32>
    %c92 = arith.constant 92 : index
    %389 = memref.load %arg2[%c92] : memref<144xf32, #tpu.memory_space<smem>>
    %390 = vector.broadcast %389 : f32 to vector<10x12xf32>
    %391 = arith.mulf %390, %380 : vector<10x12xf32>
    %392 = arith.addf %374, %391 : vector<10x12xf32>
    %c128 = arith.constant 128 : index
    %393 = memref.load %arg2[%c128] : memref<144xf32, #tpu.memory_space<smem>>
    %394 = vector.broadcast %393 : f32 to vector<10x12xf32>
    %395 = arith.mulf %394, %380 : vector<10x12xf32>
    %396 = arith.addf %378, %395 : vector<10x12xf32>
    %c2_89 = arith.constant 2 : index
    %c4_90 = arith.constant 4 : index
    %c2_91 = arith.constant 2 : index
    %397 = vector.load %arg5[%c2_89, %c4_90, %c2_91] : memref<4x18x18xf32, #tpu.memory_space<vmem>>, vector<1x10x12xf32>
    %398 = vector.shape_cast %397 : vector<1x10x12xf32> to vector<10x12xf32>
    %c21 = arith.constant 21 : index
    %399 = memref.load %arg2[%c21] : memref<144xf32, #tpu.memory_space<smem>>
    %400 = vector.broadcast %399 : f32 to vector<10x12xf32>
    %401 = arith.mulf %400, %398 : vector<10x12xf32>
    %402 = arith.addf %384, %401 : vector<10x12xf32>
    %c57 = arith.constant 57 : index
    %403 = memref.load %arg2[%c57] : memref<144xf32, #tpu.memory_space<smem>>
    %404 = vector.broadcast %403 : f32 to vector<10x12xf32>
    %405 = arith.mulf %404, %398 : vector<10x12xf32>
    %406 = arith.addf %388, %405 : vector<10x12xf32>
    %c93 = arith.constant 93 : index
    %407 = memref.load %arg2[%c93] : memref<144xf32, #tpu.memory_space<smem>>
    %408 = vector.broadcast %407 : f32 to vector<10x12xf32>
    %409 = arith.mulf %408, %398 : vector<10x12xf32>
    %410 = arith.addf %392, %409 : vector<10x12xf32>
    %c129 = arith.constant 129 : index
    %411 = memref.load %arg2[%c129] : memref<144xf32, #tpu.memory_space<smem>>
    %412 = vector.broadcast %411 : f32 to vector<10x12xf32>
    %413 = arith.mulf %412, %398 : vector<10x12xf32>
    %414 = arith.addf %396, %413 : vector<10x12xf32>
    %c2_92 = arith.constant 2 : index
    %c4_93 = arith.constant 4 : index
    %c3_94 = arith.constant 3 : index
    %415 = vector.load %arg5[%c2_92, %c4_93, %c3_94] : memref<4x18x18xf32, #tpu.memory_space<vmem>>, vector<1x10x12xf32>
    %416 = vector.shape_cast %415 : vector<1x10x12xf32> to vector<10x12xf32>
    %c22 = arith.constant 22 : index
    %417 = memref.load %arg2[%c22] : memref<144xf32, #tpu.memory_space<smem>>
    %418 = vector.broadcast %417 : f32 to vector<10x12xf32>
    %419 = arith.mulf %418, %416 : vector<10x12xf32>
    %420 = arith.addf %402, %419 : vector<10x12xf32>
    %c58 = arith.constant 58 : index
    %421 = memref.load %arg2[%c58] : memref<144xf32, #tpu.memory_space<smem>>
    %422 = vector.broadcast %421 : f32 to vector<10x12xf32>
    %423 = arith.mulf %422, %416 : vector<10x12xf32>
    %424 = arith.addf %406, %423 : vector<10x12xf32>
    %c94 = arith.constant 94 : index
    %425 = memref.load %arg2[%c94] : memref<144xf32, #tpu.memory_space<smem>>
    %426 = vector.broadcast %425 : f32 to vector<10x12xf32>
    %427 = arith.mulf %426, %416 : vector<10x12xf32>
    %428 = arith.addf %410, %427 : vector<10x12xf32>
    %c130 = arith.constant 130 : index
    %429 = memref.load %arg2[%c130] : memref<144xf32, #tpu.memory_space<smem>>
    %430 = vector.broadcast %429 : f32 to vector<10x12xf32>
    %431 = arith.mulf %430, %416 : vector<10x12xf32>
    %432 = arith.addf %414, %431 : vector<10x12xf32>
    %c2_95 = arith.constant 2 : index
    %c4_96 = arith.constant 4 : index
    %c4_97 = arith.constant 4 : index
    %433 = vector.load %arg5[%c2_95, %c4_96, %c4_97] : memref<4x18x18xf32, #tpu.memory_space<vmem>>, vector<1x10x12xf32>
    %434 = vector.shape_cast %433 : vector<1x10x12xf32> to vector<10x12xf32>
    %c23 = arith.constant 23 : index
    %435 = memref.load %arg2[%c23] : memref<144xf32, #tpu.memory_space<smem>>
    %436 = vector.broadcast %435 : f32 to vector<10x12xf32>
    %437 = arith.mulf %436, %434 : vector<10x12xf32>
    %438 = arith.addf %420, %437 : vector<10x12xf32>
    %c59 = arith.constant 59 : index
    %439 = memref.load %arg2[%c59] : memref<144xf32, #tpu.memory_space<smem>>
    %440 = vector.broadcast %439 : f32 to vector<10x12xf32>
    %441 = arith.mulf %440, %434 : vector<10x12xf32>
    %442 = arith.addf %424, %441 : vector<10x12xf32>
    %c95 = arith.constant 95 : index
    %443 = memref.load %arg2[%c95] : memref<144xf32, #tpu.memory_space<smem>>
    %444 = vector.broadcast %443 : f32 to vector<10x12xf32>
    %445 = arith.mulf %444, %434 : vector<10x12xf32>
    %446 = arith.addf %428, %445 : vector<10x12xf32>
    %c131 = arith.constant 131 : index
    %447 = memref.load %arg2[%c131] : memref<144xf32, #tpu.memory_space<smem>>
    %448 = vector.broadcast %447 : f32 to vector<10x12xf32>
    %449 = arith.mulf %448, %434 : vector<10x12xf32>
    %450 = arith.addf %432, %449 : vector<10x12xf32>
    %c2_98 = arith.constant 2 : index
    %c5_99 = arith.constant 5 : index
    %c2_100 = arith.constant 2 : index
    %451 = vector.load %arg5[%c2_98, %c5_99, %c2_100] : memref<4x18x18xf32, #tpu.memory_space<vmem>>, vector<1x10x12xf32>
    %452 = vector.shape_cast %451 : vector<1x10x12xf32> to vector<10x12xf32>
    %c24 = arith.constant 24 : index
    %453 = memref.load %arg2[%c24] : memref<144xf32, #tpu.memory_space<smem>>
    %454 = vector.broadcast %453 : f32 to vector<10x12xf32>
    %455 = arith.mulf %454, %452 : vector<10x12xf32>
    %456 = arith.addf %438, %455 : vector<10x12xf32>
    %c60 = arith.constant 60 : index
    %457 = memref.load %arg2[%c60] : memref<144xf32, #tpu.memory_space<smem>>
    %458 = vector.broadcast %457 : f32 to vector<10x12xf32>
    %459 = arith.mulf %458, %452 : vector<10x12xf32>
    %460 = arith.addf %442, %459 : vector<10x12xf32>
    %c96 = arith.constant 96 : index
    %461 = memref.load %arg2[%c96] : memref<144xf32, #tpu.memory_space<smem>>
    %462 = vector.broadcast %461 : f32 to vector<10x12xf32>
    %463 = arith.mulf %462, %452 : vector<10x12xf32>
    %464 = arith.addf %446, %463 : vector<10x12xf32>
    %c132 = arith.constant 132 : index
    %465 = memref.load %arg2[%c132] : memref<144xf32, #tpu.memory_space<smem>>
    %466 = vector.broadcast %465 : f32 to vector<10x12xf32>
    %467 = arith.mulf %466, %452 : vector<10x12xf32>
    %468 = arith.addf %450, %467 : vector<10x12xf32>
    %c2_101 = arith.constant 2 : index
    %c5_102 = arith.constant 5 : index
    %c3_103 = arith.constant 3 : index
    %469 = vector.load %arg5[%c2_101, %c5_102, %c3_103] : memref<4x18x18xf32, #tpu.memory_space<vmem>>, vector<1x10x12xf32>
    %470 = vector.shape_cast %469 : vector<1x10x12xf32> to vector<10x12xf32>
    %c25 = arith.constant 25 : index
    %471 = memref.load %arg2[%c25] : memref<144xf32, #tpu.memory_space<smem>>
    %472 = vector.broadcast %471 : f32 to vector<10x12xf32>
    %473 = arith.mulf %472, %470 : vector<10x12xf32>
    %474 = arith.addf %456, %473 : vector<10x12xf32>
    %c61 = arith.constant 61 : index
    %475 = memref.load %arg2[%c61] : memref<144xf32, #tpu.memory_space<smem>>
    %476 = vector.broadcast %475 : f32 to vector<10x12xf32>
    %477 = arith.mulf %476, %470 : vector<10x12xf32>
    %478 = arith.addf %460, %477 : vector<10x12xf32>
    %c97 = arith.constant 97 : index
    %479 = memref.load %arg2[%c97] : memref<144xf32, #tpu.memory_space<smem>>
    %480 = vector.broadcast %479 : f32 to vector<10x12xf32>
    %481 = arith.mulf %480, %470 : vector<10x12xf32>
    %482 = arith.addf %464, %481 : vector<10x12xf32>
    %c133 = arith.constant 133 : index
    %483 = memref.load %arg2[%c133] : memref<144xf32, #tpu.memory_space<smem>>
    %484 = vector.broadcast %483 : f32 to vector<10x12xf32>
    %485 = arith.mulf %484, %470 : vector<10x12xf32>
    %486 = arith.addf %468, %485 : vector<10x12xf32>
    %c2_104 = arith.constant 2 : index
    %c5_105 = arith.constant 5 : index
    %c4_106 = arith.constant 4 : index
    %487 = vector.load %arg5[%c2_104, %c5_105, %c4_106] : memref<4x18x18xf32, #tpu.memory_space<vmem>>, vector<1x10x12xf32>
    %488 = vector.shape_cast %487 : vector<1x10x12xf32> to vector<10x12xf32>
    %c26 = arith.constant 26 : index
    %489 = memref.load %arg2[%c26] : memref<144xf32, #tpu.memory_space<smem>>
    %490 = vector.broadcast %489 : f32 to vector<10x12xf32>
    %491 = arith.mulf %490, %488 : vector<10x12xf32>
    %492 = arith.addf %474, %491 : vector<10x12xf32>
    %c62 = arith.constant 62 : index
    %493 = memref.load %arg2[%c62] : memref<144xf32, #tpu.memory_space<smem>>
    %494 = vector.broadcast %493 : f32 to vector<10x12xf32>
    %495 = arith.mulf %494, %488 : vector<10x12xf32>
    %496 = arith.addf %478, %495 : vector<10x12xf32>
    %c98 = arith.constant 98 : index
    %497 = memref.load %arg2[%c98] : memref<144xf32, #tpu.memory_space<smem>>
    %498 = vector.broadcast %497 : f32 to vector<10x12xf32>
    %499 = arith.mulf %498, %488 : vector<10x12xf32>
    %500 = arith.addf %482, %499 : vector<10x12xf32>
    %c134 = arith.constant 134 : index
    %501 = memref.load %arg2[%c134] : memref<144xf32, #tpu.memory_space<smem>>
    %502 = vector.broadcast %501 : f32 to vector<10x12xf32>
    %503 = arith.mulf %502, %488 : vector<10x12xf32>
    %504 = arith.addf %486, %503 : vector<10x12xf32>
    %c3_107 = arith.constant 3 : index
    %c3_108 = arith.constant 3 : index
    %c2_109 = arith.constant 2 : index
    %505 = vector.load %arg5[%c3_107, %c3_108, %c2_109] : memref<4x18x18xf32, #tpu.memory_space<vmem>>, vector<1x10x12xf32>
    %506 = vector.shape_cast %505 : vector<1x10x12xf32> to vector<10x12xf32>
    %c27 = arith.constant 27 : index
    %507 = memref.load %arg2[%c27] : memref<144xf32, #tpu.memory_space<smem>>
    %508 = vector.broadcast %507 : f32 to vector<10x12xf32>
    %509 = arith.mulf %508, %506 : vector<10x12xf32>
    %510 = arith.addf %492, %509 : vector<10x12xf32>
    %c63 = arith.constant 63 : index
    %511 = memref.load %arg2[%c63] : memref<144xf32, #tpu.memory_space<smem>>
    %512 = vector.broadcast %511 : f32 to vector<10x12xf32>
    %513 = arith.mulf %512, %506 : vector<10x12xf32>
    %514 = arith.addf %496, %513 : vector<10x12xf32>
    %c99 = arith.constant 99 : index
    %515 = memref.load %arg2[%c99] : memref<144xf32, #tpu.memory_space<smem>>
    %516 = vector.broadcast %515 : f32 to vector<10x12xf32>
    %517 = arith.mulf %516, %506 : vector<10x12xf32>
    %518 = arith.addf %500, %517 : vector<10x12xf32>
    %c135 = arith.constant 135 : index
    %519 = memref.load %arg2[%c135] : memref<144xf32, #tpu.memory_space<smem>>
    %520 = vector.broadcast %519 : f32 to vector<10x12xf32>
    %521 = arith.mulf %520, %506 : vector<10x12xf32>
    %522 = arith.addf %504, %521 : vector<10x12xf32>
    %c3_110 = arith.constant 3 : index
    %c3_111 = arith.constant 3 : index
    %c3_112 = arith.constant 3 : index
    %523 = vector.load %arg5[%c3_110, %c3_111, %c3_112] : memref<4x18x18xf32, #tpu.memory_space<vmem>>, vector<1x10x12xf32>
    %524 = vector.shape_cast %523 : vector<1x10x12xf32> to vector<10x12xf32>
    %c28 = arith.constant 28 : index
    %525 = memref.load %arg2[%c28] : memref<144xf32, #tpu.memory_space<smem>>
    %526 = vector.broadcast %525 : f32 to vector<10x12xf32>
    %527 = arith.mulf %526, %524 : vector<10x12xf32>
    %528 = arith.addf %510, %527 : vector<10x12xf32>
    %c64 = arith.constant 64 : index
    %529 = memref.load %arg2[%c64] : memref<144xf32, #tpu.memory_space<smem>>
    %530 = vector.broadcast %529 : f32 to vector<10x12xf32>
    %531 = arith.mulf %530, %524 : vector<10x12xf32>
    %532 = arith.addf %514, %531 : vector<10x12xf32>
    %c100 = arith.constant 100 : index
    %533 = memref.load %arg2[%c100] : memref<144xf32, #tpu.memory_space<smem>>
    %534 = vector.broadcast %533 : f32 to vector<10x12xf32>
    %535 = arith.mulf %534, %524 : vector<10x12xf32>
    %536 = arith.addf %518, %535 : vector<10x12xf32>
    %c136 = arith.constant 136 : index
    %537 = memref.load %arg2[%c136] : memref<144xf32, #tpu.memory_space<smem>>
    %538 = vector.broadcast %537 : f32 to vector<10x12xf32>
    %539 = arith.mulf %538, %524 : vector<10x12xf32>
    %540 = arith.addf %522, %539 : vector<10x12xf32>
    %c3_113 = arith.constant 3 : index
    %c3_114 = arith.constant 3 : index
    %c4_115 = arith.constant 4 : index
    %541 = vector.load %arg5[%c3_113, %c3_114, %c4_115] : memref<4x18x18xf32, #tpu.memory_space<vmem>>, vector<1x10x12xf32>
    %542 = vector.shape_cast %541 : vector<1x10x12xf32> to vector<10x12xf32>
    %c29 = arith.constant 29 : index
    %543 = memref.load %arg2[%c29] : memref<144xf32, #tpu.memory_space<smem>>
    %544 = vector.broadcast %543 : f32 to vector<10x12xf32>
    %545 = arith.mulf %544, %542 : vector<10x12xf32>
    %546 = arith.addf %528, %545 : vector<10x12xf32>
    %c65 = arith.constant 65 : index
    %547 = memref.load %arg2[%c65] : memref<144xf32, #tpu.memory_space<smem>>
    %548 = vector.broadcast %547 : f32 to vector<10x12xf32>
    %549 = arith.mulf %548, %542 : vector<10x12xf32>
    %550 = arith.addf %532, %549 : vector<10x12xf32>
    %c101 = arith.constant 101 : index
    %551 = memref.load %arg2[%c101] : memref<144xf32, #tpu.memory_space<smem>>
    %552 = vector.broadcast %551 : f32 to vector<10x12xf32>
    %553 = arith.mulf %552, %542 : vector<10x12xf32>
    %554 = arith.addf %536, %553 : vector<10x12xf32>
    %c137 = arith.constant 137 : index
    %555 = memref.load %arg2[%c137] : memref<144xf32, #tpu.memory_space<smem>>
    %556 = vector.broadcast %555 : f32 to vector<10x12xf32>
    %557 = arith.mulf %556, %542 : vector<10x12xf32>
    %558 = arith.addf %540, %557 : vector<10x12xf32>
    %c3_116 = arith.constant 3 : index
    %c4_117 = arith.constant 4 : index
    %c2_118 = arith.constant 2 : index
    %559 = vector.load %arg5[%c3_116, %c4_117, %c2_118] : memref<4x18x18xf32, #tpu.memory_space<vmem>>, vector<1x10x12xf32>
    %560 = vector.shape_cast %559 : vector<1x10x12xf32> to vector<10x12xf32>
    %c30 = arith.constant 30 : index
    %561 = memref.load %arg2[%c30] : memref<144xf32, #tpu.memory_space<smem>>
    %562 = vector.broadcast %561 : f32 to vector<10x12xf32>
    %563 = arith.mulf %562, %560 : vector<10x12xf32>
    %564 = arith.addf %546, %563 : vector<10x12xf32>
    %c66 = arith.constant 66 : index
    %565 = memref.load %arg2[%c66] : memref<144xf32, #tpu.memory_space<smem>>
    %566 = vector.broadcast %565 : f32 to vector<10x12xf32>
    %567 = arith.mulf %566, %560 : vector<10x12xf32>
    %568 = arith.addf %550, %567 : vector<10x12xf32>
    %c102 = arith.constant 102 : index
    %569 = memref.load %arg2[%c102] : memref<144xf32, #tpu.memory_space<smem>>
    %570 = vector.broadcast %569 : f32 to vector<10x12xf32>
    %571 = arith.mulf %570, %560 : vector<10x12xf32>
    %572 = arith.addf %554, %571 : vector<10x12xf32>
    %c138 = arith.constant 138 : index
    %573 = memref.load %arg2[%c138] : memref<144xf32, #tpu.memory_space<smem>>
    %574 = vector.broadcast %573 : f32 to vector<10x12xf32>
    %575 = arith.mulf %574, %560 : vector<10x12xf32>
    %576 = arith.addf %558, %575 : vector<10x12xf32>
    %c3_119 = arith.constant 3 : index
    %c4_120 = arith.constant 4 : index
    %c3_121 = arith.constant 3 : index
    %577 = vector.load %arg5[%c3_119, %c4_120, %c3_121] : memref<4x18x18xf32, #tpu.memory_space<vmem>>, vector<1x10x12xf32>
    %578 = vector.shape_cast %577 : vector<1x10x12xf32> to vector<10x12xf32>
    %c31 = arith.constant 31 : index
    %579 = memref.load %arg2[%c31] : memref<144xf32, #tpu.memory_space<smem>>
    %580 = vector.broadcast %579 : f32 to vector<10x12xf32>
    %581 = arith.mulf %580, %578 : vector<10x12xf32>
    %582 = arith.addf %564, %581 : vector<10x12xf32>
    %c67 = arith.constant 67 : index
    %583 = memref.load %arg2[%c67] : memref<144xf32, #tpu.memory_space<smem>>
    %584 = vector.broadcast %583 : f32 to vector<10x12xf32>
    %585 = arith.mulf %584, %578 : vector<10x12xf32>
    %586 = arith.addf %568, %585 : vector<10x12xf32>
    %c103 = arith.constant 103 : index
    %587 = memref.load %arg2[%c103] : memref<144xf32, #tpu.memory_space<smem>>
    %588 = vector.broadcast %587 : f32 to vector<10x12xf32>
    %589 = arith.mulf %588, %578 : vector<10x12xf32>
    %590 = arith.addf %572, %589 : vector<10x12xf32>
    %c139 = arith.constant 139 : index
    %591 = memref.load %arg2[%c139] : memref<144xf32, #tpu.memory_space<smem>>
    %592 = vector.broadcast %591 : f32 to vector<10x12xf32>
    %593 = arith.mulf %592, %578 : vector<10x12xf32>
    %594 = arith.addf %576, %593 : vector<10x12xf32>
    %c3_122 = arith.constant 3 : index
    %c4_123 = arith.constant 4 : index
    %c4_124 = arith.constant 4 : index
    %595 = vector.load %arg5[%c3_122, %c4_123, %c4_124] : memref<4x18x18xf32, #tpu.memory_space<vmem>>, vector<1x10x12xf32>
    %596 = vector.shape_cast %595 : vector<1x10x12xf32> to vector<10x12xf32>
    %c32 = arith.constant 32 : index
    %597 = memref.load %arg2[%c32] : memref<144xf32, #tpu.memory_space<smem>>
    %598 = vector.broadcast %597 : f32 to vector<10x12xf32>
    %599 = arith.mulf %598, %596 : vector<10x12xf32>
    %600 = arith.addf %582, %599 : vector<10x12xf32>
    %c68 = arith.constant 68 : index
    %601 = memref.load %arg2[%c68] : memref<144xf32, #tpu.memory_space<smem>>
    %602 = vector.broadcast %601 : f32 to vector<10x12xf32>
    %603 = arith.mulf %602, %596 : vector<10x12xf32>
    %604 = arith.addf %586, %603 : vector<10x12xf32>
    %c104 = arith.constant 104 : index
    %605 = memref.load %arg2[%c104] : memref<144xf32, #tpu.memory_space<smem>>
    %606 = vector.broadcast %605 : f32 to vector<10x12xf32>
    %607 = arith.mulf %606, %596 : vector<10x12xf32>
    %608 = arith.addf %590, %607 : vector<10x12xf32>
    %c140 = arith.constant 140 : index
    %609 = memref.load %arg2[%c140] : memref<144xf32, #tpu.memory_space<smem>>
    %610 = vector.broadcast %609 : f32 to vector<10x12xf32>
    %611 = arith.mulf %610, %596 : vector<10x12xf32>
    %612 = arith.addf %594, %611 : vector<10x12xf32>
    %c3_125 = arith.constant 3 : index
    %c5_126 = arith.constant 5 : index
    %c2_127 = arith.constant 2 : index
    %613 = vector.load %arg5[%c3_125, %c5_126, %c2_127] : memref<4x18x18xf32, #tpu.memory_space<vmem>>, vector<1x10x12xf32>
    %614 = vector.shape_cast %613 : vector<1x10x12xf32> to vector<10x12xf32>
    %c33 = arith.constant 33 : index
    %615 = memref.load %arg2[%c33] : memref<144xf32, #tpu.memory_space<smem>>
    %616 = vector.broadcast %615 : f32 to vector<10x12xf32>
    %617 = arith.mulf %616, %614 : vector<10x12xf32>
    %618 = arith.addf %600, %617 : vector<10x12xf32>
    %c69 = arith.constant 69 : index
    %619 = memref.load %arg2[%c69] : memref<144xf32, #tpu.memory_space<smem>>
    %620 = vector.broadcast %619 : f32 to vector<10x12xf32>
    %621 = arith.mulf %620, %614 : vector<10x12xf32>
    %622 = arith.addf %604, %621 : vector<10x12xf32>
    %c105 = arith.constant 105 : index
    %623 = memref.load %arg2[%c105] : memref<144xf32, #tpu.memory_space<smem>>
    %624 = vector.broadcast %623 : f32 to vector<10x12xf32>
    %625 = arith.mulf %624, %614 : vector<10x12xf32>
    %626 = arith.addf %608, %625 : vector<10x12xf32>
    %c141 = arith.constant 141 : index
    %627 = memref.load %arg2[%c141] : memref<144xf32, #tpu.memory_space<smem>>
    %628 = vector.broadcast %627 : f32 to vector<10x12xf32>
    %629 = arith.mulf %628, %614 : vector<10x12xf32>
    %630 = arith.addf %612, %629 : vector<10x12xf32>
    %c3_128 = arith.constant 3 : index
    %c5_129 = arith.constant 5 : index
    %c3_130 = arith.constant 3 : index
    %631 = vector.load %arg5[%c3_128, %c5_129, %c3_130] : memref<4x18x18xf32, #tpu.memory_space<vmem>>, vector<1x10x12xf32>
    %632 = vector.shape_cast %631 : vector<1x10x12xf32> to vector<10x12xf32>
    %c34 = arith.constant 34 : index
    %633 = memref.load %arg2[%c34] : memref<144xf32, #tpu.memory_space<smem>>
    %634 = vector.broadcast %633 : f32 to vector<10x12xf32>
    %635 = arith.mulf %634, %632 : vector<10x12xf32>
    %636 = arith.addf %618, %635 : vector<10x12xf32>
    %c70 = arith.constant 70 : index
    %637 = memref.load %arg2[%c70] : memref<144xf32, #tpu.memory_space<smem>>
    %638 = vector.broadcast %637 : f32 to vector<10x12xf32>
    %639 = arith.mulf %638, %632 : vector<10x12xf32>
    %640 = arith.addf %622, %639 : vector<10x12xf32>
    %c106 = arith.constant 106 : index
    %641 = memref.load %arg2[%c106] : memref<144xf32, #tpu.memory_space<smem>>
    %642 = vector.broadcast %641 : f32 to vector<10x12xf32>
    %643 = arith.mulf %642, %632 : vector<10x12xf32>
    %644 = arith.addf %626, %643 : vector<10x12xf32>
    %c142 = arith.constant 142 : index
    %645 = memref.load %arg2[%c142] : memref<144xf32, #tpu.memory_space<smem>>
    %646 = vector.broadcast %645 : f32 to vector<10x12xf32>
    %647 = arith.mulf %646, %632 : vector<10x12xf32>
    %648 = arith.addf %630, %647 : vector<10x12xf32>
    %c3_131 = arith.constant 3 : index
    %c5_132 = arith.constant 5 : index
    %c4_133 = arith.constant 4 : index
    %649 = vector.load %arg5[%c3_131, %c5_132, %c4_133] : memref<4x18x18xf32, #tpu.memory_space<vmem>>, vector<1x10x12xf32>
    %650 = vector.shape_cast %649 : vector<1x10x12xf32> to vector<10x12xf32>
    %c35 = arith.constant 35 : index
    %651 = memref.load %arg2[%c35] : memref<144xf32, #tpu.memory_space<smem>>
    %652 = vector.broadcast %651 : f32 to vector<10x12xf32>
    %653 = arith.mulf %652, %650 : vector<10x12xf32>
    %654 = arith.addf %636, %653 : vector<10x12xf32>
    %c71 = arith.constant 71 : index
    %655 = memref.load %arg2[%c71] : memref<144xf32, #tpu.memory_space<smem>>
    %656 = vector.broadcast %655 : f32 to vector<10x12xf32>
    %657 = arith.mulf %656, %650 : vector<10x12xf32>
    %658 = arith.addf %640, %657 : vector<10x12xf32>
    %c107 = arith.constant 107 : index
    %659 = memref.load %arg2[%c107] : memref<144xf32, #tpu.memory_space<smem>>
    %660 = vector.broadcast %659 : f32 to vector<10x12xf32>
    %661 = arith.mulf %660, %650 : vector<10x12xf32>
    %662 = arith.addf %644, %661 : vector<10x12xf32>
    %c143 = arith.constant 143 : index
    %663 = memref.load %arg2[%c143] : memref<144xf32, #tpu.memory_space<smem>>
    %664 = vector.broadcast %663 : f32 to vector<10x12xf32>
    %665 = arith.mulf %664, %650 : vector<10x12xf32>
    %666 = arith.addf %648, %665 : vector<10x12xf32>
    %c0_134 = arith.constant 0 : index
    %c0_135 = arith.constant 0 : index
    %c0_136 = arith.constant 0 : index
    %c0_137 = arith.constant 0 : index
    %667 = vector.load %arg4[%c0_134, %c0_135, %c0_136, %c0_137] : memref<1x4x10x12xf32, #tpu.memory_space<vmem>>, vector<1x1x10x12xf32>
    %668 = vector.shape_cast %667 : vector<1x1x10x12xf32> to vector<10x12xf32>
    %669 = vector.shape_cast %654 : vector<10x12xf32> to vector<1x1x10x12xf32>
    tpu.vector_store %arg4[%c0_134, %c0_135, %c0_136, %c0_137], %669 {strides = array<i32>} : memref<1x4x10x12xf32, #tpu.memory_space<vmem>>, vector<1x1x10x12xf32>,
    %c0_138 = arith.constant 0 : index
    %c1_139 = arith.constant 1 : index
    %c0_140 = arith.constant 0 : index
    %c0_141 = arith.constant 0 : index
    %670 = vector.load %arg4[%c0_138, %c1_139, %c0_140, %c0_141] : memref<1x4x10x12xf32, #tpu.memory_space<vmem>>, vector<1x1x10x12xf32>
    %671 = vector.shape_cast %670 : vector<1x1x10x12xf32> to vector<10x12xf32>
    %672 = vector.shape_cast %658 : vector<10x12xf32> to vector<1x1x10x12xf32>
    tpu.vector_store %arg4[%c0_138, %c1_139, %c0_140, %c0_141], %672 {strides = array<i32>} : memref<1x4x10x12xf32, #tpu.memory_space<vmem>>, vector<1x1x10x12xf32>,
    %c0_142 = arith.constant 0 : index
    %c2_143 = arith.constant 2 : index
    %c0_144 = arith.constant 0 : index
    %c0_145 = arith.constant 0 : index
    %673 = vector.load %arg4[%c0_142, %c2_143, %c0_144, %c0_145] : memref<1x4x10x12xf32, #tpu.memory_space<vmem>>, vector<1x1x10x12xf32>
    %674 = vector.shape_cast %673 : vector<1x1x10x12xf32> to vector<10x12xf32>
    %675 = vector.shape_cast %662 : vector<10x12xf32> to vector<1x1x10x12xf32>
    tpu.vector_store %arg4[%c0_142, %c2_143, %c0_144, %c0_145], %675 {strides = array<i32>} : memref<1x4x10x12xf32, #tpu.memory_space<vmem>>, vector<1x1x10x12xf32>,
    %c0_146 = arith.constant 0 : index
    %c3_147 = arith.constant 3 : index
    %c0_148 = arith.constant 0 : index
    %c0_149 = arith.constant 0 : index
    %676 = vector.load %arg4[%c0_146, %c3_147, %c0_148, %c0_149] : memref<1x4x10x12xf32, #tpu.memory_space<vmem>>, vector<1x1x10x12xf32>
    %677 = vector.shape_cast %676 : vector<1x1x10x12xf32> to vector<10x12xf32>
    %678 = vector.shape_cast %666 : vector<10x12xf32> to vector<1x1x10x12xf32>
    tpu.vector_store %arg4[%c0_146, %c3_147, %c0_148, %c0_149], %678 {strides = array<i32>} : memref<1x4x10x12xf32, #tpu.memory_space<vmem>>, vector<1x1x10x12xf32>,
    return
  }
  func.func @transform_0(%arg0: i32) -> (i32, i32, i32, i32) {
    %c0_i32 = arith.constant 0 : i32
    %c0_i32_0 = arith.constant 0 : i32
    %c0_i32_1 = arith.constant 0 : i32
    %c0_i32_2 = arith.constant 0 : i32
    return %arg0, %c0_i32, %c0_i32_0, %c0_i32_1 : i32, i32, i32, i32
  }
  func.func @transform_1(%arg0: i32) -> i32 {
    %c0_i32 = arith.constant 0 : i32
    %c0_i32_0 = arith.constant 0 : i32
    return %c0_i32 : i32
  }
  func.func @transform_2(%arg0: i32) -> i32 {
    %c0_i32 = arith.constant 0 : i32
    %c0_i32_0 = arith.constant 0 : i32
    return %c0_i32 : i32
  }
  func.func @transform_3(%arg0: i32) -> (i32, i32, i32, i32) {
    %c0_i32 = arith.constant 0 : i32
    %c0_i32_0 = arith.constant 0 : i32
    %c0_i32_1 = arith.constant 0 : i32
    %c0_i32_2 = arith.constant 0 : i32
    return %arg0, %c0_i32, %c0_i32_0, %c0_i32_1 : i32, i32, i32, i32
  }
}

</mosaic_0001>

<llo_original>
// kernel: tpu_custom_call.1
$region0: #{tpu_custom_call.1}
  #allocation0 [shape = 'u32[]', space=smem, size = 0x4, offset = 0x4, fixed_abs, tag = 'smem constant byte address 0x4 - core index']
  #allocation1 [shape = 'u32[144,128]{1,0:T(1,128)}', space=vmem, size = 0x12000, scoped, tag = 'internal scratch']
  #allocation2 [shape = 'f32[4,18,18]{2,1,0:T(8,128)}', space=vmem, size = 0xc000, scoped, tag = 'scratch operand']
  %s0 = inlined_call_operand.vmem [shape: f32[2,4,10,12], index: 0, kind: input, shape index: {}]
  %s1 = inlined_call_operand.vmem [shape: f32[144], index: 1, kind: input, shape index: {}]
  %s2 = inlined_call_operand.vmem [shape: f32[4], index: 2, kind: input, shape index: {}]
  %s3 = inlined_call_operand.vmem [shape: f32[2,4,10,12], index: 3, kind: output, shape index: {}]
  %s4 = sld [smem:[#allocation0]]
  $region53: #{tpu_custom_call.1} parent=0
    _
  %s6 = ssub.s32 1, %s4
  %s7 = scalar_select 0, %s6, %s4
  $region1: #{tpu_custom_call.1} parent=0
    #allocation3 [shape = 'u8[1024]{0}', space=smem, size = 0x400, scoped, tag = 'input window, operand 1, single buffered']
    #allocation4 [shape = 's32[2]{0}', space=sflag, size = 0x8, scoped, tag = 'scoped memory for tpu_custom_call.1']
    #allocation5 [shape = 'u8[512]{0}', space=smem, size = 0x200, scoped, tag = 'input window, operand 2, single buffered']
    #allocation6 [shape = 's32[1]{0}', space=sflag, size = 0x4, scoped, tag = 'scoped memory for tpu_custom_call.1']
    %8 = vsyncpa [#allocation4], 0
    %9 = vsyncpa [#allocation6], 0
    loop: start=0, step=1, limit=4
    $region2: #{tpu_custom_call.1} parent=1 // loop_pre_header
      _
    $region3: #{tpu_custom_call.1} parent=1 // loop_header
      %s11 = sphi 0, %s15
      %p12 = scmp.ge.s32.totalorder %s11, 4
      %s21 = sphi 0, %s23
      %s24 = sphi 0, %s21
      %s25 = sphi 0, %s24
      %s41 = sphi 0, %s25
      %s45 = sphi 0, %s45
      %s47 = sphi 0, %s45
      %s48 = sphi 0, %s47
      %s62 = sphi 0, %s48
      %s66 = sphi 0, %s66
      %s68 = sphi 0, %s66
      %s69 = sphi 0, %s68
      %s83 = sphi 0, %s69
      %s89 = sphi 0, %s91
      %s92 = sphi 0, %s89
      %s93 = sphi 0, %s92
      %s109 = sphi 0, %s93
    $region4: #{tpu_custom_call.1} parent=1 // loop_header_branch
      %14 = sbr.rel (%p12) target = $region8
    $region5: #{tpu_custom_call.1} parent=1 // loop_body
      %s16 = ssub.s32 %s11, 1
      %s17 = ssub.s32 %s11, 2
      %s18 = sadd.s32 %s11, 1
      %s19 = ssub.s32 %s11, %s18
      %p20 = scmp.eq.s32.totalorder %s19, 0
      %s22 = sadd.s32 %s21, 1
      %s23 = scalar_select %p20, %s21, %s22
      %p26 = pneg %p20
      %p27 = scmp.eq.s32.totalorder %s11, 1
      %p28 = por %p26, %p27
      %p29 = scmp.ne.s32.totalorder %s21, %s24
      %p30 = scmp.eq.s32.totalorder %s11, 0
      %p31 = por %p29, %p30
      %p32 = scmp.ne.s32.totalorder %s21, %s24
      %p33 = scmp.eq.s32.totalorder %s16, 1
      %p34 = por %p32, %p33
      %p35 = scmp.ne.s32.totalorder %s24, %s25
      %p36 = scmp.eq.s32.totalorder %s16, 0
      %p37 = por %p35, %p36
      %p38 = scmp.ne.s32.totalorder %s24, %s25
      %p39 = scmp.eq.s32.totalorder %s17, 1
      %p40 = por %p38, %p39
      %p42 = scmp.ne.s32.totalorder %s25, %s41
      %p43 = scmp.eq.s32.totalorder %s17, 0
      %p44 = por %p42, %p43
      %s46 = sadd.s32 %s45, 1
      %p49 = scmp.eq.s32.totalorder %s11, 1
      %p50 = scmp.ne.s32.totalorder %s45, %s47
      %p51 = scmp.eq.s32.totalorder %s11, 0
      %p52 = por %p50, %p51
      %p53 = scmp.ne.s32.totalorder %s45, %s47
      %p54 = scmp.eq.s32.totalorder %s16, 1
      %p55 = por %p53, %p54
      %p56 = scmp.ne.s32.totalorder %s47, %s48
      %p57 = scmp.eq.s32.totalorder %s16, 0
      %p58 = por %p56, %p57
      %p59 = scmp.ne.s32.totalorder %s47, %s48
      %p60 = scmp.eq.s32.totalorder %s17, 1
      %p61 = por %p59, %p60
      %p63 = scmp.ne.s32.totalorder %s48, %s62
      %p64 = scmp.eq.s32.totalorder %s17, 0
      %p65 = por %p63, %p64
      %s67 = sadd.s32 %s66, 1
      %p70 = scmp.eq.s32.totalorder %s11, 1
      %p71 = scmp.ne.s32.totalorder %s66, %s68
      %p72 = scmp.eq.s32.totalorder %s11, 0
      %p73 = por %p71, %p72
      %p74 = scmp.ne.s32.totalorder %s66, %s68
      %p75 = scmp.eq.s32.totalorder %s16, 1
      %p76 = por %p74, %p75
      %p77 = scmp.ne.s32.totalorder %s68, %s69
      %p78 = scmp.eq.s32.totalorder %s16, 0
      %p79 = por %p77, %p78
      %p80 = scmp.ne.s32.totalorder %s68, %s69
      %p81 = scmp.eq.s32.totalorder %s17, 1
      %p82 = por %p80, %p81
      %p84 = scmp.ne.s32.totalorder %s69, %s83
      %p85 = scmp.eq.s32.totalorder %s17, 0
      %p86 = por %p84, %p85
      %s87 = ssub.s32 %s11, %s18
      %p88 = scmp.eq.s32.totalorder %s87, 0
      %s90 = sadd.s32 %s89, 1
      %s91 = scalar_select %p88, %s89, %s90
      %p94 = pneg %p88
      %p95 = scmp.eq.s32.totalorder %s11, 1
      %p96 = por %p94, %p95
      %p97 = scmp.ne.s32.totalorder %s89, %s92
      %p98 = scmp.eq.s32.totalorder %s11, 0
      %p99 = por %p97, %p98
      %p100 = scmp.ne.s32.totalorder %s89, %s92
      %p101 = scmp.eq.s32.totalorder %s16, 1
      %p102 = por %p100, %p101
      %p103 = scmp.ne.s32.totalorder %s92, %s93
      %p104 = scmp.eq.s32.totalorder %s16, 0
      %p105 = por %p103, %p104
      %p106 = scmp.ne.s32.totalorder %s92, %s93
      %p107 = scmp.eq.s32.totalorder %s17, 1
      %p108 = por %p106, %p107
      %p110 = scmp.ne.s32.totalorder %s93, %s109
      %p111 = scmp.eq.s32.totalorder %s17, 0
      %p112 = por %p110, %p111
      %p113 = scmp.le.s32.totalorder 1, %s11
      %p114 = scmp.lt.s32.totalorder %s11, 3
      %p115 = pnand %p113, %p114
      %p116 = pneg %p115
      // Predicated region
      $region9: #{tpu_custom_call.1} parent=5 // pred_check
        _
      $region10: #{tpu_custom_call.1} parent=5 // pred_check_branch
        %118 = sbr.rel (%p115) target = $region12
      $region11: #{tpu_custom_call.1} parent=5 // pred_region
        %s119 = ssub.s32 %s11, 1
        // Predicated region
        $region13: #{tpu_custom_call.1} parent=11 // pred_check
          %p120 = pneg %p58
        $region14: #{tpu_custom_call.1} parent=11 // pred_check_branch
          %122 = sbr.rel (%p120) target = $region16
        $region15: #{tpu_custom_call.1} parent=11 // pred_region
          %s124 = ssub.s32 32, 32
          %125 = vsyncadd [#allocation4], %s124
          %s127 = sshll.u32 %s1, 4
          %s128 = int_to_ptr.vmem [resolvable:$true] %s127
          %130 = dma.vmem_to_smem %s128, 32, [#allocation3], [#allocation4]
        $region16: #{tpu_custom_call.1} parent=11 // pred_fallthru
          _
        // Predicated region
        $region17: #{tpu_custom_call.1} parent=11 // pred_check
          %p131 = pneg %p79
        $region18: #{tpu_custom_call.1} parent=11 // pred_check_branch
          %133 = sbr.rel (%p131) target = $region20
        $region19: #{tpu_custom_call.1} parent=11 // pred_region
          %s135 = ssub.s32 16, 16
          %136 = vsyncadd [#allocation6], %s135
          %s138 = sshll.u32 %s2, 4
          %s139 = int_to_ptr.vmem [resolvable:$true] %s138
          %141 = dma.vmem_to_smem %s139, 16, [#allocation5], [#allocation6]
        $region20: #{tpu_custom_call.1} parent=11 // pred_fallthru
          _
      $region12: #{tpu_custom_call.1} parent=5 // pred_fallthru
        _
      %p142 = scmp.lt.s32.totalorder %s11, 2
      // Predicated region
      $region21: #{tpu_custom_call.1} parent=5 // pred_check
        %p143 = pneg %p142
      $region22: #{tpu_custom_call.1} parent=5 // pred_check_branch
        %145 = sbr.rel (%p143) target = $region24
      $region23: #{tpu_custom_call.1} parent=5 // pred_region
        // Predicated region
        $region25: #{tpu_custom_call.1} parent=23 // pred_check
          %p146 = pneg %p31
        $region26: #{tpu_custom_call.1} parent=23 // pred_check_branch
          %148 = sbr.rel (%p146) target = $region28
        $region27: #{tpu_custom_call.1} parent=23 // pred_region
          %p149 = scmp.lt.s32.totalorder %s11, 1
          %s150 = scalar_select %p149, %s11, 1
          %s151 = smul.addr %s150, 8
          %s152 = smul.addr %s151, 8
          %s153 = scalar_lea.vmem %s0, %s152
        $region28: #{tpu_custom_call.1} parent=23 // pred_fallthru
          _
      $region24: #{tpu_custom_call.1} parent=5 // pred_fallthru
        _
      %p154 = scmp.le.s32.totalorder 1, %s11
      %p155 = scmp.lt.s32.totalorder %s11, 3
      %p156 = pnand %p154, %p155
      %p157 = pneg %p156
      // Predicated region
      $region29: #{tpu_custom_call.1} parent=5 // pred_check
        _
      $region30: #{tpu_custom_call.1} parent=5 // pred_check_branch
        %159 = sbr.rel (%p156) target = $region32
      $region31: #{tpu_custom_call.1} parent=5 // pred_region
        %s160 = ssub.s32 %s11, 1
        // Predicated region
        $region33: #{tpu_custom_call.1} parent=31 // pred_check
          %p161 = pneg %p58
        $region34: #{tpu_custom_call.1} parent=31 // pred_check_branch
          %163 = sbr.rel (%p161) target = $region36
        $region35: #{tpu_custom_call.1} parent=31 // pred_region
          %164 = dma.done [#allocation4], 32
        $region36: #{tpu_custom_call.1} parent=31 // pred_fallthru
          _
        // Predicated region
        $region37: #{tpu_custom_call.1} parent=31 // pred_check
          %p165 = pneg %p79
        $region38: #{tpu_custom_call.1} parent=31 // pred_check_branch
          %167 = sbr.rel (%p165) target = $region40
        $region39: #{tpu_custom_call.1} parent=31 // pred_region
          %168 = dma.done [#allocation6], 16
        $region40: #{tpu_custom_call.1} parent=31 // pred_fallthru
          _
        %169 = sfence
        %p170 = scmp.lt.s32.totalorder %s16, 1
        %s171 = scalar_select %p170, %s16, 1
        %s172 = smul.addr %s171, 8
        %s173 = smul.addr %s172, 8
        %s174 = scalar_lea.vmem %s0, %s173
        %p175 = pneg %p37
        %p176 = pneg %p34
        %p177 = pneg %p58
        %p178 = pneg %p55
        %p179 = pneg %p79
        %p180 = pneg %p76
        %p181 = pneg %p105
        %p182 = pneg %p102
        %p183 = scmp.lt.s32.totalorder %s16, 1
        %s184 = scalar_select %p183, %s16, 1
        %s185 = smul.addr %s184, 8
        %s186 = smul.addr %s185, 8
        %s187 = scalar_lea.vmem %s3, %s186
        %p188 = scmp.lt.s32.totalorder %s16, 1
        %s189 = scalar_select %p188, %s16, 1
        %s190 = smul.addr %s189, 8
        %s191 = smul.addr %s190, 8
        %s192 = scalar_lea.vmem %s0, %s191
        %p193 = scmp.lt.s32.totalorder %s16, 1
        %s194 = scalar_select %p193, %s16, 1
        %s195 = smul.addr %s194, 8
        %s196 = smul.addr %s195, 8
        %s197 = scalar_lea.vmem %s3, %s196
        %vm198 = vcmask 142336
        %199 = vst.msk [vmem:[#allocation2] sm:$0xf] %vm198, 0.0
        %200 = vst.msk [vmem:[#allocation2 + $0x18] sm:$0xf] %vm198, 0.0
        %201 = vst.msk [vmem:[#allocation2 + $0x30] sm:$0xf] %vm198, 0.0
        %202 = vst.msk [vmem:[#allocation2 + $0x48] sm:$0xf] %vm198, 0.0
        %203 = vst.msk [vmem:[#allocation2 + $0xe] sm:$0xf] %vm198, 0.0
        %204 = vst.msk [vmem:[#allocation2 + $0x26] sm:$0xf] %vm198, 0.0
        %205 = vst.msk [vmem:[#allocation2 + $0x3e] sm:$0xf] %vm198, 0.0
        %206 = vst.msk [vmem:[#allocation2 + $0x56] sm:$0xf] %vm198, 0.0
        %vm207 = vcmask 23552
        %208 = vst.msk [vmem:[#allocation2 + $0x4] sm:$0xff] %vm207, 0.0
        %vm209 = vcmask 17408
        %210 = vst.msk [vmem:[#allocation2 + $0xc] sm:$0x3] %vm209, 0.0
        %211 = vst.msk [vmem:[#allocation2 + $0x1c] sm:$0xff] %vm207, 0.0
        %212 = vst.msk [vmem:[#allocation2 + $0x24] sm:$0x3] %vm209, 0.0
        %213 = vst.msk [vmem:[#allocation2 + $0x34] sm:$0xff] %vm207, 0.0
        %214 = vst.msk [vmem:[#allocation2 + $0x3c] sm:$0x3] %vm209, 0.0
        %215 = vst.msk [vmem:[#allocation2 + $0x4c] sm:$0xff] %vm207, 0.0
        %216 = vst.msk [vmem:[#allocation2 + $0x54] sm:$0x3] %vm209, 0.0
        %vm217 = vcmask 146552
        %218 = vst.msk [vmem:[#allocation2 + $0x4] sm:$0xff] %vm217, 0.0
        %vm219 = vcmask 140408
        %220 = vst.msk [vmem:[#allocation2 + $0xc] sm:$0x3] %vm219, 0.0
        %221 = vst.msk [vmem:[#allocation2 + $0x1c] sm:$0xff] %vm217, 0.0
        %222 = vst.msk [vmem:[#allocation2 + $0x24] sm:$0x3] %vm219, 0.0
        %223 = vst.msk [vmem:[#allocation2 + $0x34] sm:$0xff] %vm217, 0.0
        %224 = vst.msk [vmem:[#allocation2 + $0x3c] sm:$0x3] %vm219, 0.0
        %225 = vst.msk [vmem:[#allocation2 + $0x4c] sm:$0xff] %vm217, 0.0
        %226 = vst.msk [vmem:[#allocation2 + $0x54] sm:$0x3] %vm219, 0.0
        %v227 = vld [vmem:[%s192] sm:$0xff]
        %v228 = vld [vmem:[%s192 + $0x8] sm:$0x3]
        %v229 = vld [vmem:[%s192 + $0x10] sm:$0xff]
        %v230 = vld [vmem:[%s192 + $0x18] sm:$0x3]
        %v231 = vld [vmem:[%s192 + $0x20] sm:$0xff]
        %v232 = vld [vmem:[%s192 + $0x28] sm:$0x3]
        %v233 = vld [vmem:[%s192 + $0x30] sm:$0xff]
        %v234 = vld [vmem:[%s192 + $0x38] sm:$0x3]
        %243 = vrot.lane.b32.xlu0 %v227, 3
        %v244 = vpop.permute.xlu0 %243
        %245 = vrot.lane.b32.xlu0 %v228, 3
        %v246 = vpop.permute.xlu0 %245
        %247 = vrot.lane.b32.xlu0 %v229, 3
        %v248 = vpop.permute.xlu0 %247
        %249 = vrot.lane.b32.xlu0 %v230, 3
        %v250 = vpop.permute.xlu0 %249
        %251 = vrot.lane.b32.xlu0 %v231, 3
        %v252 = vpop.permute.xlu0 %251
        %253 = vrot.lane.b32.xlu0 %v232, 3
        %v254 = vpop.permute.xlu0 %253
        %255 = vrot.lane.b32.xlu0 %v233, 3
        %v256 = vpop.permute.xlu0 %255
        %257 = vrot.lane.b32.xlu0 %v234, 3
        %v258 = vpop.permute.xlu0 %257
        %vm267 = vcmask 121880
        %268 = vst.msk [vmem:[#allocation2 + $0x4] sm:$0xff] %vm267, %v244
        %vm269 = vcmask 115736
        %270 = vst.msk [vmem:[#allocation2 + $0xc] sm:$0x3] %vm269, %v246
        %271 = vst.msk [vmem:[#allocation2 + $0x1c] sm:$0xff] %vm267, %v248
        %272 = vst.msk [vmem:[#allocation2 + $0x24] sm:$0x3] %vm269, %v250
        %273 = vst.msk [vmem:[#allocation2 + $0x34] sm:$0xff] %vm267, %v252
        %274 = vst.msk [vmem:[#allocation2 + $0x3c] sm:$0x3] %vm269, %v254
        %275 = vst.msk [vmem:[#allocation2 + $0x4c] sm:$0xff] %vm267, %v256
        %276 = vst.msk [vmem:[#allocation2 + $0x54] sm:$0x3] %vm269, %v258
        %s277 = sld [smem:[#allocation5]]
        %v278 = vstv %s277
        %s279 = sld [smem:[#allocation5 + $0x1]]
        %v280 = vstv %s279
        %s281 = sld [smem:[#allocation5 + $0x2]]
        %v282 = vstv %s281
        %s283 = sld [smem:[#allocation5 + $0x3]]
        %v284 = vstv %s283
        %v285 = vld [vmem:[#allocation2 + $0x3] sm:$0xff]
        %v286 = vld [vmem:[#allocation2 + $0xb] sm:$0x3]
        %s287 = sld [smem:[#allocation3]]
        %v288 = vstv %s287
        %v289 = vmul.f32 %v288, %v285
        %v290 = vmul.f32 %v288, %v286
        %v291 = vadd.f32 %v278, %v289
        %v292 = vadd.f32 %v278, %v290
        %s293 = sld [smem:[#allocation3 + $0x24]]
        %v294 = vstv %s293
        %v295 = vmul.f32 %v294, %v285
        %v296 = vmul.f32 %v294, %v286
        %v297 = vadd.f32 %v280, %v295
        %v298 = vadd.f32 %v280, %v296
        %s299 = sld [smem:[#allocation3 + $0x48]]
        %v300 = vstv %s299
        %v301 = vmul.f32 %v300, %v285
        %v302 = vmul.f32 %v300, %v286
        %v303 = vadd.f32 %v282, %v301
        %v304 = vadd.f32 %v282, %v302
        %s305 = sld [smem:[#allocation3 + $0x6c]]
        %v306 = vstv %s305
        %v307 = vmul.f32 %v306, %v285
        %v308 = vmul.f32 %v306, %v286
        %v309 = vadd.f32 %v284, %v307
        %v310 = vadd.f32 %v284, %v308
        %s311 = sld [smem:[#allocation3 + $0x1]]
        %v312 = vstv %s311
        %v313 = vmul.f32 %v312, %v285
        %v314 = vmul.f32 %v312, %v286
        %317 = vrot.lane.b32.xlu0 %v313, 127
        %v318 = vpop.permute.xlu0 %317
        %319 = vrot.lane.b32.xlu0 %v314, 127
        %v320 = vpop.permute.xlu0 %319
        %v323 = vadd.f32 %v291, %v318
        %v324 = vadd.f32 %v292, %v320
        %s325 = sld [smem:[#allocation3 + $0x25]]
        %v326 = vstv %s325
        %v327 = vmul.f32 %v326, %v285
        %v328 = vmul.f32 %v326, %v286
        %331 = vrot.lane.b32.xlu0 %v327, 127
        %v332 = vpop.permute.xlu0 %331
        %333 = vrot.lane.b32.xlu0 %v328, 127
        %v334 = vpop.permute.xlu0 %333
        %v337 = vadd.f32 %v297, %v332
        %v338 = vadd.f32 %v298, %v334
        %s339 = sld [smem:[#allocation3 + $0x49]]
        %v340 = vstv %s339
        %v341 = vmul.f32 %v340, %v285
        %v342 = vmul.f32 %v340, %v286
        %345 = vrot.lane.b32.xlu0 %v341, 127
        %v346 = vpop.permute.xlu0 %345
        %347 = vrot.lane.b32.xlu0 %v342, 127
        %v348 = vpop.permute.xlu0 %347
        %v351 = vadd.f32 %v303, %v346
        %v352 = vadd.f32 %v304, %v348
        %s353 = sld [smem:[#allocation3 + $0x6d]]
        %v354 = vstv %s353
        %v355 = vmul.f32 %v354, %v285
        %v356 = vmul.f32 %v354, %v286
        %359 = vrot.lane.b32.xlu0 %v355, 127
        %v360 = vpop.permute.xlu0 %359
        %361 = vrot.lane.b32.xlu0 %v356, 127
        %v362 = vpop.permute.xlu0 %361
        %v365 = vadd.f32 %v309, %v360
        %v366 = vadd.f32 %v310, %v362
        %s367 = sld [smem:[#allocation3 + $0x2]]
        %v368 = vstv %s367
        %v369 = vmul.f32 %v368, %v285
        %v370 = vmul.f32 %v368, %v286
        %373 = vrot.lane.b32.xlu0 %v369, 126
        %v374 = vpop.permute.xlu0 %373
        %375 = vrot.lane.b32.xlu0 %v370, 126
        %v376 = vpop.permute.xlu0 %375
        %v379 = vadd.f32 %v323, %v374
        %v380 = vadd.f32 %v324, %v376
        %s381 = sld [smem:[#allocation3 + $0x26]]
        %v382 = vstv %s381
        %v383 = vmul.f32 %v382, %v285
        %v384 = vmul.f32 %v382, %v286
        %387 = vrot.lane.b32.xlu0 %v383, 126
        %v388 = vpop.permute.xlu0 %387
        %389 = vrot.lane.b32.xlu0 %v384, 126
        %v390 = vpop.permute.xlu0 %389
        %v393 = vadd.f32 %v337, %v388
        %v394 = vadd.f32 %v338, %v390
        %s395 = sld [smem:[#allocation3 + $0x4a]]
        %v396 = vstv %s395
        %v397 = vmul.f32 %v396, %v285
        %v398 = vmul.f32 %v396, %v286
        %401 = vrot.lane.b32.xlu0 %v397, 126
        %v402 = vpop.permute.xlu0 %401
        %403 = vrot.lane.b32.xlu0 %v398, 126
        %v404 = vpop.permute.xlu0 %403
        %v407 = vadd.f32 %v351, %v402
        %v408 = vadd.f32 %v352, %v404
        %s409 = sld [smem:[#allocation3 + $0x6e]]
        %v410 = vstv %s409
        %v411 = vmul.f32 %v410, %v285
        %v412 = vmul.f32 %v410, %v286
        %415 = vrot.lane.b32.xlu0 %v411, 126
        %v416 = vpop.permute.xlu0 %415
        %417 = vrot.lane.b32.xlu0 %v412, 126
        %v418 = vpop.permute.xlu0 %417
        %v421 = vadd.f32 %v365, %v416
        %v422 = vadd.f32 %v366, %v418
        %v423 = vld [vmem:[#allocation2 + $0x4] sm:$0xff]
        %v424 = vld [vmem:[#allocation2 + $0xc] sm:$0x3]
        %s425 = sld [smem:[#allocation3 + $0x3]]
        %v426 = vstv %s425
        %v427 = vmul.f32 %v426, %v423
        %v428 = vmul.f32 %v426, %v424
        %v429 = vadd.f32 %v379, %v427
        %v430 = vadd.f32 %v380, %v428
        %s431 = sld [smem:[#allocation3 + $0x27]]
        %v432 = vstv %s431
        %v433 = vmul.f32 %v432, %v423
        %v434 = vmul.f32 %v432, %v424
        %v435 = vadd.f32 %v393, %v433
        %v436 = vadd.f32 %v394, %v434
        %s437 = sld [smem:[#allocation3 + $0x4b]]
        %v438 = vstv %s437
        %v439 = vmul.f32 %v438, %v423
        %v440 = vmul.f32 %v438, %v424
        %v441 = vadd.f32 %v407, %v439
        %v442 = vadd.f32 %v408, %v440
        %s443 = sld [smem:[#allocation3 + $0x6f]]
        %v444 = vstv %s443
        %v445 = vmul.f32 %v444, %v423
        %v446 = vmul.f32 %v444, %v424
        %v447 = vadd.f32 %v421, %v445
        %v448 = vadd.f32 %v422, %v446
        %s449 = sld [smem:[#allocation3 + $0x4]]
        %v450 = vstv %s449
        %v451 = vmul.f32 %v450, %v423
        %v452 = vmul.f32 %v450, %v424
        %455 = vrot.lane.b32.xlu0 %v451, 127
        %v456 = vpop.permute.xlu0 %455
        %457 = vrot.lane.b32.xlu0 %v452, 127
        %v458 = vpop.permute.xlu0 %457
        %v461 = vadd.f32 %v429, %v456
        %v462 = vadd.f32 %v430, %v458
        %s463 = sld [smem:[#allocation3 + $0x28]]
        %v464 = vstv %s463
        %v465 = vmul.f32 %v464, %v423
        %v466 = vmul.f32 %v464, %v424
        %469 = vrot.lane.b32.xlu0 %v465, 127
        %v470 = vpop.permute.xlu0 %469
        %471 = vrot.lane.b32.xlu0 %v466, 127
        %v472 = vpop.permute.xlu0 %471
        %v475 = vadd.f32 %v435, %v470
        %v476 = vadd.f32 %v436, %v472
        %s477 = sld [smem:[#allocation3 + $0x4c]]
        %v478 = vstv %s477
        %v479 = vmul.f32 %v478, %v423
        %v480 = vmul.f32 %v478, %v424
        %483 = vrot.lane.b32.xlu0 %v479, 127
        %v484 = vpop.permute.xlu0 %483
        %485 = vrot.lane.b32.xlu0 %v480, 127
        %v486 = vpop.permute.xlu0 %485
        %v489 = vadd.f32 %v441, %v484
        %v490 = vadd.f32 %v442, %v486
        %s491 = sld [smem:[#allocation3 + $0x70]]
        %v492 = vstv %s491
        %v493 = vmul.f32 %v492, %v423
        %v494 = vmul.f32 %v492, %v424
        %497 = vrot.lane.b32.xlu0 %v493, 127
        %v498 = vpop.permute.xlu0 %497
        %499 = vrot.lane.b32.xlu0 %v494, 127
        %v500 = vpop.permute.xlu0 %499
        %v503 = vadd.f32 %v447, %v498
        %v504 = vadd.f32 %v448, %v500
        %s505 = sld [smem:[#allocation3 + $0x5]]
        %v506 = vstv %s505
        %v507 = vmul.f32 %v506, %v423
        %v508 = vmul.f32 %v506, %v424
        %511 = vrot.lane.b32.xlu0 %v507, 126
        %v512 = vpop.permute.xlu0 %511
        %513 = vrot.lane.b32.xlu0 %v508, 126
        %v514 = vpop.permute.xlu0 %513
        %v517 = vadd.f32 %v461, %v512
        %v518 = vadd.f32 %v462, %v514
        %s519 = sld [smem:[#allocation3 + $0x29]]
        %v520 = vstv %s519
        %v521 = vmul.f32 %v520, %v423
        %v522 = vmul.f32 %v520, %v424
        %525 = vrot.lane.b32.xlu0 %v521, 126
        %v526 = vpop.permute.xlu0 %525
        %527 = vrot.lane.b32.xlu0 %v522, 126
        %v528 = vpop.permute.xlu0 %527
        %v531 = vadd.f32 %v475, %v526
        %v532 = vadd.f32 %v476, %v528
        %s533 = sld [smem:[#allocation3 + $0x4d]]
        %v534 = vstv %s533
        %v535 = vmul.f32 %v534, %v423
        %v536 = vmul.f32 %v534, %v424
        %539 = vrot.lane.b32.xlu0 %v535, 126
        %v540 = vpop.permute.xlu0 %539
        %541 = vrot.lane.b32.xlu0 %v536, 126
        %v542 = vpop.permute.xlu0 %541
        %v545 = vadd.f32 %v489, %v540
        %v546 = vadd.f32 %v490, %v542
        %s547 = sld [smem:[#allocation3 + $0x71]]
        %v548 = vstv %s547
        %v549 = vmul.f32 %v548, %v423
        %v550 = vmul.f32 %v548, %v424
        %553 = vrot.lane.b32.xlu0 %v549, 126
        %v554 = vpop.permute.xlu0 %553
        %555 = vrot.lane.b32.xlu0 %v550, 126
        %v556 = vpop.permute.xlu0 %555
        %v559 = vadd.f32 %v503, %v554
        %v560 = vadd.f32 %v504, %v556
        %v561 = vld [vmem:[#allocation2 + $0x5] sm:$0xff]
        %v562 = vld [vmem:[#allocation2 + $0xd] sm:$0x3]
        %s563 = sld [smem:[#allocation3 + $0x6]]
        %v564 = vstv %s563
        %v565 = vmul.f32 %v564, %v561
        %v566 = vmul.f32 %v564, %v562
        %v567 = vadd.f32 %v517, %v565
        %v568 = vadd.f32 %v518, %v566
        %s569 = sld [smem:[#allocation3 + $0x2a]]
        %v570 = vstv %s569
        %v571 = vmul.f32 %v570, %v561
        %v572 = vmul.f32 %v570, %v562
        %v573 = vadd.f32 %v531, %v571
        %v574 = vadd.f32 %v532, %v572
        %s575 = sld [smem:[#allocation3 + $0x4e]]
        %v576 = vstv %s575
        %v577 = vmul.f32 %v576, %v561
        %v578 = vmul.f32 %v576, %v562
        %v579 = vadd.f32 %v545, %v577
        %v580 = vadd.f32 %v546, %v578
        %s581 = sld [smem:[#allocation3 + $0x72]]
        %v582 = vstv %s581
        %v583 = vmul.f32 %v582, %v561
        %v584 = vmul.f32 %v582, %v562
        %v585 = vadd.f32 %v559, %v583
        %v586 = vadd.f32 %v560, %v584
        %s587 = sld [smem:[#allocation3 + $0x7]]
        %v588 = vstv %s587
        %v589 = vmul.f32 %v588, %v561
        %v590 = vmul.f32 %v588, %v562
        %593 = vrot.lane.b32.xlu0 %v589, 127
        %v594 = vpop.permute.xlu0 %593
        %595 = vrot.lane.b32.xlu0 %v590, 127
        %v596 = vpop.permute.xlu0 %595
        %v599 = vadd.f32 %v567, %v594
        %v600 = vadd.f32 %v568, %v596
        %s601 = sld [smem:[#allocation3 + $0x2b]]
        %v602 = vstv %s601
        %v603 = vmul.f32 %v602, %v561
        %v604 = vmul.f32 %v602, %v562
        %607 = vrot.lane.b32.xlu0 %v603, 127
        %v608 = vpop.permute.xlu0 %607
        %609 = vrot.lane.b32.xlu0 %v604, 127
        %v610 = vpop.permute.xlu0 %609
        %v613 = vadd.f32 %v573, %v608
        %v614 = vadd.f32 %v574, %v610
        %s615 = sld [smem:[#allocation3 + $0x4f]]
        %v616 = vstv %s615
        %v617 = vmul.f32 %v616, %v561
        %v618 = vmul.f32 %v616, %v562
        %621 = vrot.lane.b32.xlu0 %v617, 127
        %v622 = vpop.permute.xlu0 %621
        %623 = vrot.lane.b32.xlu0 %v618, 127
        %v624 = vpop.permute.xlu0 %623
        %v627 = vadd.f32 %v579, %v622
        %v628 = vadd.f32 %v580, %v624
        %s629 = sld [smem:[#allocation3 + $0x73]]
        %v630 = vstv %s629
        %v631 = vmul.f32 %v630, %v561
        %v632 = vmul.f32 %v630, %v562
        %635 = vrot.lane.b32.xlu0 %v631, 127
        %v636 = vpop.permute.xlu0 %635
        %637 = vrot.lane.b32.xlu0 %v632, 127
        %v638 = vpop.permute.xlu0 %637
        %v641 = vadd.f32 %v585, %v636
        %v642 = vadd.f32 %v586, %v638
        %s643 = sld [smem:[#allocation3 + $0x8]]
        %v644 = vstv %s643
        %v645 = vmul.f32 %v644, %v561
        %v646 = vmul.f32 %v644, %v562
        %649 = vrot.lane.b32.xlu0 %v645, 126
        %v650 = vpop.permute.xlu0 %649
        %651 = vrot.lane.b32.xlu0 %v646, 126
        %v652 = vpop.permute.xlu0 %651
        %v655 = vadd.f32 %v599, %v650
        %v656 = vadd.f32 %v600, %v652
        %s657 = sld [smem:[#allocation3 + $0x2c]]
        %v658 = vstv %s657
        %v659 = vmul.f32 %v658, %v561
        %v660 = vmul.f32 %v658, %v562
        %663 = vrot.lane.b32.xlu0 %v659, 126
        %v664 = vpop.permute.xlu0 %663
        %665 = vrot.lane.b32.xlu0 %v660, 126
        %v666 = vpop.permute.xlu0 %665
        %v669 = vadd.f32 %v613, %v664
        %v670 = vadd.f32 %v614, %v666
        %s671 = sld [smem:[#allocation3 + $0x50]]
        %v672 = vstv %s671
        %v673 = vmul.f32 %v672, %v561
        %v674 = vmul.f32 %v672, %v562
        %677 = vrot.lane.b32.xlu0 %v673, 126
        %v678 = vpop.permute.xlu0 %677
        %679 = vrot.lane.b32.xlu0 %v674, 126
        %v680 = vpop.permute.xlu0 %679
        %v683 = vadd.f32 %v627, %v678
        %v684 = vadd.f32 %v628, %v680
        %s685 = sld [smem:[#allocation3 + $0x74]]
        %v686 = vstv %s685
        %v687 = vmul.f32 %v686, %v561
        %v688 = vmul.f32 %v686, %v562
        %691 = vrot.lane.b32.xlu0 %v687, 126
        %v692 = vpop.permute.xlu0 %691
        %693 = vrot.lane.b32.xlu0 %v688, 126
        %v694 = vpop.permute.xlu0 %693
        %v697 = vadd.f32 %v641, %v692
        %v698 = vadd.f32 %v642, %v694
        %s699 = scalar_lea.vmem [#allocation2], 24
        %v700 = vld [vmem:[%s699 + $0x3] sm:$0xff]
        %v701 = vld [vmem:[%s699 + $0xb] sm:$0x3]
        %s702 = sld [smem:[#allocation3 + $0x9]]
        %v703 = vstv %s702
        %v704 = vmul.f32 %v703, %v700
        %v705 = vmul.f32 %v703, %v701
        %v706 = vadd.f32 %v655, %v704
        %v707 = vadd.f32 %v656, %v705
        %s708 = sld [smem:[#allocation3 + $0x2d]]
        %v709 = vstv %s708
        %v710 = vmul.f32 %v709, %v700
        %v711 = vmul.f32 %v709, %v701
        %v712 = vadd.f32 %v669, %v710
        %v713 = vadd.f32 %v670, %v711
        %s714 = sld [smem:[#allocation3 + $0x51]]
        %v715 = vstv %s714
        %v716 = vmul.f32 %v715, %v700
        %v717 = vmul.f32 %v715, %v701
        %v718 = vadd.f32 %v683, %v716
        %v719 = vadd.f32 %v684, %v717
        %s720 = sld [smem:[#allocation3 + $0x75]]
        %v721 = vstv %s720
        %v722 = vmul.f32 %v721, %v700
        %v723 = vmul.f32 %v721, %v701
        %v724 = vadd.f32 %v697, %v722
        %v725 = vadd.f32 %v698, %v723
        %s726 = sld [smem:[#allocation3 + $0xa]]
        %v727 = vstv %s726
        %v728 = vmul.f32 %v727, %v700
        %v729 = vmul.f32 %v727, %v701
        %732 = vrot.lane.b32.xlu0 %v728, 127
        %v733 = vpop.permute.xlu0 %732
        %734 = vrot.lane.b32.xlu0 %v729, 127
        %v735 = vpop.permute.xlu0 %734
        %v738 = vadd.f32 %v706, %v733
        %v739 = vadd.f32 %v707, %v735
        %s740 = sld [smem:[#allocation3 + $0x2e]]
        %v741 = vstv %s740
        %v742 = vmul.f32 %v741, %v700
        %v743 = vmul.f32 %v741, %v701
        %746 = vrot.lane.b32.xlu0 %v742, 127
        %v747 = vpop.permute.xlu0 %746
        %748 = vrot.lane.b32.xlu0 %v743, 127
        %v749 = vpop.permute.xlu0 %748
        %v752 = vadd.f32 %v712, %v747
        %v753 = vadd.f32 %v713, %v749
        %s754 = sld [smem:[#allocation3 + $0x52]]
        %v755 = vstv %s754
        %v756 = vmul.f32 %v755, %v700
        %v757 = vmul.f32 %v755, %v701
        %760 = vrot.lane.b32.xlu0 %v756, 127
        %v761 = vpop.permute.xlu0 %760
        %762 = vrot.lane.b32.xlu0 %v757, 127
        %v763 = vpop.permute.xlu0 %762
        %v766 = vadd.f32 %v718, %v761
        %v767 = vadd.f32 %v719, %v763
        %s768 = sld [smem:[#allocation3 + $0x76]]
        %v769 = vstv %s768
        %v770 = vmul.f32 %v769, %v700
        %v771 = vmul.f32 %v769, %v701
        %774 = vrot.lane.b32.xlu0 %v770, 127
        %v775 = vpop.permute.xlu0 %774
        %776 = vrot.lane.b32.xlu0 %v771, 127
        %v777 = vpop.permute.xlu0 %776
        %v780 = vadd.f32 %v724, %v775
        %v781 = vadd.f32 %v725, %v777
        %s782 = sld [smem:[#allocation3 + $0xb]]
        %v783 = vstv %s782
        %v784 = vmul.f32 %v783, %v700
        %v785 = vmul.f32 %v783, %v701
        %788 = vrot.lane.b32.xlu0 %v784, 126
        %v789 = vpop.permute.xlu0 %788
        %790 = vrot.lane.b32.xlu0 %v785, 126
        %v791 = vpop.permute.xlu0 %790
        %v794 = vadd.f32 %v738, %v789
        %v795 = vadd.f32 %v739, %v791
        %s796 = sld [smem:[#allocation3 + $0x2f]]
        %v797 = vstv %s796
        %v798 = vmul.f32 %v797, %v700
        %v799 = vmul.f32 %v797, %v701
        %802 = vrot.lane.b32.xlu0 %v798, 126
        %v803 = vpop.permute.xlu0 %802
        %804 = vrot.lane.b32.xlu0 %v799, 126
        %v805 = vpop.permute.xlu0 %804
        %v808 = vadd.f32 %v752, %v803
        %v809 = vadd.f32 %v753, %v805
        %s810 = sld [smem:[#allocation3 + $0x53]]
        %v811 = vstv %s810
        %v812 = vmul.f32 %v811, %v700
        %v813 = vmul.f32 %v811, %v701
        %816 = vrot.lane.b32.xlu0 %v812, 126
        %v817 = vpop.permute.xlu0 %816
        %818 = vrot.lane.b32.xlu0 %v813, 126
        %v819 = vpop.permute.xlu0 %818
        %v822 = vadd.f32 %v766, %v817
        %v823 = vadd.f32 %v767, %v819
        %s824 = sld [smem:[#allocation3 + $0x77]]
        %v825 = vstv %s824
        %v826 = vmul.f32 %v825, %v700
        %v827 = vmul.f32 %v825, %v701
        %830 = vrot.lane.b32.xlu0 %v826, 126
        %v831 = vpop.permute.xlu0 %830
        %832 = vrot.lane.b32.xlu0 %v827, 126
        %v833 = vpop.permute.xlu0 %832
        %v836 = vadd.f32 %v780, %v831
        %v837 = vadd.f32 %v781, %v833
        %v838 = vld [vmem:[%s699 + $0x4] sm:$0xff]
        %v839 = vld [vmem:[%s699 + $0xc] sm:$0x3]
        %s840 = sld [smem:[#allocation3 + $0xc]]
        %v841 = vstv %s840
        %v842 = vmul.f32 %v841, %v838
        %v843 = vmul.f32 %v841, %v839
        %v844 = vadd.f32 %v794, %v842
        %v845 = vadd.f32 %v795, %v843
        %s846 = sld [smem:[#allocation3 + $0x30]]
        %v847 = vstv %s846
        %v848 = vmul.f32 %v847, %v838
        %v849 = vmul.f32 %v847, %v839
        %v850 = vadd.f32 %v808, %v848
        %v851 = vadd.f32 %v809, %v849
        %s852 = sld [smem:[#allocation3 + $0x54]]
        %v853 = vstv %s852
        %v854 = vmul.f32 %v853, %v838
        %v855 = vmul.f32 %v853, %v839
        %v856 = vadd.f32 %v822, %v854
        %v857 = vadd.f32 %v823, %v855
        %s858 = sld [smem:[#allocation3 + $0x78]]
        %v859 = vstv %s858
        %v860 = vmul.f32 %v859, %v838
        %v861 = vmul.f32 %v859, %v839
        %v862 = vadd.f32 %v836, %v860
        %v863 = vadd.f32 %v837, %v861
        %s864 = sld [smem:[#allocation3 + $0xd]]
        %v865 = vstv %s864
        %v866 = vmul.f32 %v865, %v838
        %v867 = vmul.f32 %v865, %v839
        %870 = vrot.lane.b32.xlu0 %v866, 127
        %v871 = vpop.permute.xlu0 %870
        %872 = vrot.lane.b32.xlu0 %v867, 127
        %v873 = vpop.permute.xlu0 %872
        %v876 = vadd.f32 %v844, %v871
        %v877 = vadd.f32 %v845, %v873
        %s878 = sld [smem:[#allocation3 + $0x31]]
        %v879 = vstv %s878
        %v880 = vmul.f32 %v879, %v838
        %v881 = vmul.f32 %v879, %v839
        %884 = vrot.lane.b32.xlu0 %v880, 127
        %v885 = vpop.permute.xlu0 %884
        %886 = vrot.lane.b32.xlu0 %v881, 127
        %v887 = vpop.permute.xlu0 %886
        %v890 = vadd.f32 %v850, %v885
        %v891 = vadd.f32 %v851, %v887
        %s892 = sld [smem:[#allocation3 + $0x55]]
        %v893 = vstv %s892
        %v894 = vmul.f32 %v893, %v838
        %v895 = vmul.f32 %v893, %v839
        %898 = vrot.lane.b32.xlu0 %v894, 127
        %v899 = vpop.permute.xlu0 %898
        %900 = vrot.lane.b32.xlu0 %v895, 127
        %v901 = vpop.permute.xlu0 %900
        %v904 = vadd.f32 %v856, %v899
        %v905 = vadd.f32 %v857, %v901
        %s906 = sld [smem:[#allocation3 + $0x79]]
        %v907 = vstv %s906
        %v908 = vmul.f32 %v907, %v838
        %v909 = vmul.f32 %v907, %v839
        %912 = vrot.lane.b32.xlu0 %v908, 127
        %v913 = vpop.permute.xlu0 %912
        %914 = vrot.lane.b32.xlu0 %v909, 127
        %v915 = vpop.permute.xlu0 %914
        %v918 = vadd.f32 %v862, %v913
        %v919 = vadd.f32 %v863, %v915
        %s920 = sld [smem:[#allocation3 + $0xe]]
        %v921 = vstv %s920
        %v922 = vmul.f32 %v921, %v838
        %v923 = vmul.f32 %v921, %v839
        %926 = vrot.lane.b32.xlu0 %v922, 126
        %v927 = vpop.permute.xlu0 %926
        %928 = vrot.lane.b32.xlu0 %v923, 126
        %v929 = vpop.permute.xlu0 %928
        %v932 = vadd.f32 %v876, %v927
        %v933 = vadd.f32 %v877, %v929
        %s934 = sld [smem:[#allocation3 + $0x32]]
        %v935 = vstv %s934
        %v936 = vmul.f32 %v935, %v838
        %v937 = vmul.f32 %v935, %v839
        %940 = vrot.lane.b32.xlu0 %v936, 126
        %v941 = vpop.permute.xlu0 %940
        %942 = vrot.lane.b32.xlu0 %v937, 126
        %v943 = vpop.permute.xlu0 %942
        %v946 = vadd.f32 %v890, %v941
        %v947 = vadd.f32 %v891, %v943
        %s948 = sld [smem:[#allocation3 + $0x56]]
        %v949 = vstv %s948
        %v950 = vmul.f32 %v949, %v838
        %v951 = vmul.f32 %v949, %v839
        %954 = vrot.lane.b32.xlu0 %v950, 126
        %v955 = vpop.permute.xlu0 %954
        %956 = vrot.lane.b32.xlu0 %v951, 126
        %v957 = vpop.permute.xlu0 %956
        %v960 = vadd.f32 %v904, %v955
        %v961 = vadd.f32 %v905, %v957
        %s962 = sld [smem:[#allocation3 + $0x7a]]
        %v963 = vstv %s962
        %v964 = vmul.f32 %v963, %v838
        %v965 = vmul.f32 %v963, %v839
        %968 = vrot.lane.b32.xlu0 %v964, 126
        %v969 = vpop.permute.xlu0 %968
        %970 = vrot.lane.b32.xlu0 %v965, 126
        %v971 = vpop.permute.xlu0 %970
        %v974 = vadd.f32 %v918, %v969
        %v975 = vadd.f32 %v919, %v971
        %v976 = vld [vmem:[%s699 + $0x5] sm:$0xff]
        %v977 = vld [vmem:[%s699 + $0xd] sm:$0x3]
        %s978 = sld [smem:[#allocation3 + $0xf]]
        %v979 = vstv %s978
        %v980 = vmul.f32 %v979, %v976
        %v981 = vmul.f32 %v979, %v977
        %v982 = vadd.f32 %v932, %v980
        %v983 = vadd.f32 %v933, %v981
        %s984 = sld [smem:[#allocation3 + $0x33]]
        %v985 = vstv %s984
        %v986 = vmul.f32 %v985, %v976
        %v987 = vmul.f32 %v985, %v977
        %v988 = vadd.f32 %v946, %v986
        %v989 = vadd.f32 %v947, %v987
        %s990 = sld [smem:[#allocation3 + $0x57]]
        %v991 = vstv %s990
        %v992 = vmul.f32 %v991, %v976
        %v993 = vmul.f32 %v991, %v977
        %v994 = vadd.f32 %v960, %v992
        %v995 = vadd.f32 %v961, %v993
        %s996 = sld [smem:[#allocation3 + $0x7b]]
        %v997 = vstv %s996
        %v998 = vmul.f32 %v997, %v976
        %v999 = vmul.f32 %v997, %v977
        %v1000 = vadd.f32 %v974, %v998
        %v1001 = vadd.f32 %v975, %v999
        %s1002 = sld [smem:[#allocation3 + $0x10]]
        %v1003 = vstv %s1002
        %v1004 = vmul.f32 %v1003, %v976
        %v1005 = vmul.f32 %v1003, %v977
        %1008 = vrot.lane.b32.xlu0 %v1004, 127
        %v1009 = vpop.permute.xlu0 %1008
        %1010 = vrot.lane.b32.xlu0 %v1005, 127
        %v1011 = vpop.permute.xlu0 %1010
        %v1014 = vadd.f32 %v982, %v1009
        %v1015 = vadd.f32 %v983, %v1011
        %s1016 = sld [smem:[#allocation3 + $0x34]]
        %v1017 = vstv %s1016
        %v1018 = vmul.f32 %v1017, %v976
        %v1019 = vmul.f32 %v1017, %v977
        %1022 = vrot.lane.b32.xlu0 %v1018, 127
        %v1023 = vpop.permute.xlu0 %1022
        %1024 = vrot.lane.b32.xlu0 %v1019, 127
        %v1025 = vpop.permute.xlu0 %1024
        %v1028 = vadd.f32 %v988, %v1023
        %v1029 = vadd.f32 %v989, %v1025
        %s1030 = sld [smem:[#allocation3 + $0x58]]
        %v1031 = vstv %s1030
        %v1032 = vmul.f32 %v1031, %v976
        %v1033 = vmul.f32 %v1031, %v977
        %1036 = vrot.lane.b32.xlu0 %v1032, 127
        %v1037 = vpop.permute.xlu0 %1036
        %1038 = vrot.lane.b32.xlu0 %v1033, 127
        %v1039 = vpop.permute.xlu0 %1038
        %v1042 = vadd.f32 %v994, %v1037
        %v1043 = vadd.f32 %v995, %v1039
        %s1044 = sld [smem:[#allocation3 + $0x7c]]
        %v1045 = vstv %s1044
        %v1046 = vmul.f32 %v1045, %v976
        %v1047 = vmul.f32 %v1045, %v977
        %1050 = vrot.lane.b32.xlu0 %v1046, 127
        %v1051 = vpop.permute.xlu0 %1050
        %1052 = vrot.lane.b32.xlu0 %v1047, 127
        %v1053 = vpop.permute.xlu0 %1052
        %v1056 = vadd.f32 %v1000, %v1051
        %v1057 = vadd.f32 %v1001, %v1053
        %s1058 = sld [smem:[#allocation3 + $0x11]]
        %v1059 = vstv %s1058
        %v1060 = vmul.f32 %v1059, %v976
        %v1061 = vmul.f32 %v1059, %v977
        %1064 = vrot.lane.b32.xlu0 %v1060, 126
        %v1065 = vpop.permute.xlu0 %1064
        %1066 = vrot.lane.b32.xlu0 %v1061, 126
        %v1067 = vpop.permute.xlu0 %1066
        %v1070 = vadd.f32 %v1014, %v1065
        %v1071 = vadd.f32 %v1015, %v1067
        %s1072 = sld [smem:[#allocation3 + $0x35]]
        %v1073 = vstv %s1072
        %v1074 = vmul.f32 %v1073, %v976
        %v1075 = vmul.f32 %v1073, %v977
        %1078 = vrot.lane.b32.xlu0 %v1074, 126
        %v1079 = vpop.permute.xlu0 %1078
        %1080 = vrot.lane.b32.xlu0 %v1075, 126
        %v1081 = vpop.permute.xlu0 %1080
        %v1084 = vadd.f32 %v1028, %v1079
        %v1085 = vadd.f32 %v1029, %v1081
        %s1086 = sld [smem:[#allocation3 + $0x59]]
        %v1087 = vstv %s1086
        %v1088 = vmul.f32 %v1087, %v976
        %v1089 = vmul.f32 %v1087, %v977
        %1092 = vrot.lane.b32.xlu0 %v1088, 126
        %v1093 = vpop.permute.xlu0 %1092
        %1094 = vrot.lane.b32.xlu0 %v1089, 126
        %v1095 = vpop.permute.xlu0 %1094
        %v1098 = vadd.f32 %v1042, %v1093
        %v1099 = vadd.f32 %v1043, %v1095
        %s1100 = sld [smem:[#allocation3 + $0x7d]]
        %v1101 = vstv %s1100
        %v1102 = vmul.f32 %v1101, %v976
        %v1103 = vmul.f32 %v1101, %v977
        %1106 = vrot.lane.b32.xlu0 %v1102, 126
        %v1107 = vpop.permute.xlu0 %1106
        %1108 = vrot.lane.b32.xlu0 %v1103, 126
        %v1109 = vpop.permute.xlu0 %1108
        %v1112 = vadd.f32 %v1056, %v1107
        %v1113 = vadd.f32 %v1057, %v1109
        %s1114 = scalar_lea.vmem [#allocation2], 48
        %v1115 = vld [vmem:[%s1114 + $0x3] sm:$0xff]
        %v1116 = vld [vmem:[%s1114 + $0xb] sm:$0x3]
        %s1117 = sld [smem:[#allocation3 + $0x12]]
        %v1118 = vstv %s1117
        %v1119 = vmul.f32 %v1118, %v1115
        %v1120 = vmul.f32 %v1118, %v1116
        %v1121 = vadd.f32 %v1070, %v1119
        %v1122 = vadd.f32 %v1071, %v1120
        %s1123 = sld [smem:[#allocation3 + $0x36]]
        %v1124 = vstv %s1123
        %v1125 = vmul.f32 %v1124, %v1115
        %v1126 = vmul.f32 %v1124, %v1116
        %v1127 = vadd.f32 %v1084, %v1125
        %v1128 = vadd.f32 %v1085, %v1126
        %s1129 = sld [smem:[#allocation3 + $0x5a]]
        %v1130 = vstv %s1129
        %v1131 = vmul.f32 %v1130, %v1115
        %v1132 = vmul.f32 %v1130, %v1116
        %v1133 = vadd.f32 %v1098, %v1131
        %v1134 = vadd.f32 %v1099, %v1132
        %s1135 = sld [smem:[#allocation3 + $0x7e]]
        %v1136 = vstv %s1135
        %v1137 = vmul.f32 %v1136, %v1115
        %v1138 = vmul.f32 %v1136, %v1116
        %v1139 = vadd.f32 %v1112, %v1137
        %v1140 = vadd.f32 %v1113, %v1138
        %s1141 = sld [smem:[#allocation3 + $0x13]]
        %v1142 = vstv %s1141
        %v1143 = vmul.f32 %v1142, %v1115
        %v1144 = vmul.f32 %v1142, %v1116
        %1147 = vrot.lane.b32.xlu0 %v1143, 127
        %v1148 = vpop.permute.xlu0 %1147
        %1149 = vrot.lane.b32.xlu0 %v1144, 127
        %v1150 = vpop.permute.xlu0 %1149
        %v1153 = vadd.f32 %v1121, %v1148
        %v1154 = vadd.f32 %v1122, %v1150
        %s1155 = sld [smem:[#allocation3 + $0x37]]
        %v1156 = vstv %s1155
        %v1157 = vmul.f32 %v1156, %v1115
        %v1158 = vmul.f32 %v1156, %v1116
        %1161 = vrot.lane.b32.xlu0 %v1157, 127
        %v1162 = vpop.permute.xlu0 %1161
        %1163 = vrot.lane.b32.xlu0 %v1158, 127
        %v1164 = vpop.permute.xlu0 %1163
        %v1167 = vadd.f32 %v1127, %v1162
        %v1168 = vadd.f32 %v1128, %v1164
        %s1169 = sld [smem:[#allocation3 + $0x5b]]
        %v1170 = vstv %s1169
        %v1171 = vmul.f32 %v1170, %v1115
        %v1172 = vmul.f32 %v1170, %v1116
        %1175 = vrot.lane.b32.xlu0 %v1171, 127
        %v1176 = vpop.permute.xlu0 %1175
        %1177 = vrot.lane.b32.xlu0 %v1172, 127
        %v1178 = vpop.permute.xlu0 %1177
        %v1181 = vadd.f32 %v1133, %v1176
        %v1182 = vadd.f32 %v1134, %v1178
        %s1183 = sld [smem:[#allocation3 + $0x7f]]
        %v1184 = vstv %s1183
        %v1185 = vmul.f32 %v1184, %v1115
        %v1186 = vmul.f32 %v1184, %v1116
        %1189 = vrot.lane.b32.xlu0 %v1185, 127
        %v1190 = vpop.permute.xlu0 %1189
        %1191 = vrot.lane.b32.xlu0 %v1186, 127
        %v1192 = vpop.permute.xlu0 %1191
        %v1195 = vadd.f32 %v1139, %v1190
        %v1196 = vadd.f32 %v1140, %v1192
        %s1197 = sld [smem:[#allocation3 + $0x14]]
        %v1198 = vstv %s1197
        %v1199 = vmul.f32 %v1198, %v1115
        %v1200 = vmul.f32 %v1198, %v1116
        %1203 = vrot.lane.b32.xlu0 %v1199, 126
        %v1204 = vpop.permute.xlu0 %1203
        %1205 = vrot.lane.b32.xlu0 %v1200, 126
        %v1206 = vpop.permute.xlu0 %1205
        %v1209 = vadd.f32 %v1153, %v1204
        %v1210 = vadd.f32 %v1154, %v1206
        %s1211 = sld [smem:[#allocation3 + $0x38]]
        %v1212 = vstv %s1211
        %v1213 = vmul.f32 %v1212, %v1115
        %v1214 = vmul.f32 %v1212, %v1116
        %1217 = vrot.lane.b32.xlu0 %v1213, 126
        %v1218 = vpop.permute.xlu0 %1217
        %1219 = vrot.lane.b32.xlu0 %v1214, 126
        %v1220 = vpop.permute.xlu0 %1219
        %v1223 = vadd.f32 %v1167, %v1218
        %v1224 = vadd.f32 %v1168, %v1220
        %s1225 = sld [smem:[#allocation3 + $0x5c]]
        %v1226 = vstv %s1225
        %v1227 = vmul.f32 %v1226, %v1115
        %v1228 = vmul.f32 %v1226, %v1116
        %1231 = vrot.lane.b32.xlu0 %v1227, 126
        %v1232 = vpop.permute.xlu0 %1231
        %1233 = vrot.lane.b32.xlu0 %v1228, 126
        %v1234 = vpop.permute.xlu0 %1233
        %v1237 = vadd.f32 %v1181, %v1232
        %v1238 = vadd.f32 %v1182, %v1234
        %s1239 = sld [smem:[#allocation3 + $0x80]]
        %v1240 = vstv %s1239
        %v1241 = vmul.f32 %v1240, %v1115
        %v1242 = vmul.f32 %v1240, %v1116
        %1245 = vrot.lane.b32.xlu0 %v1241, 126
        %v1246 = vpop.permute.xlu0 %1245
        %1247 = vrot.lane.b32.xlu0 %v1242, 126
        %v1248 = vpop.permute.xlu0 %1247
        %v1251 = vadd.f32 %v1195, %v1246
        %v1252 = vadd.f32 %v1196, %v1248
        %v1253 = vld [vmem:[%s1114 + $0x4] sm:$0xff]
        %v1254 = vld [vmem:[%s1114 + $0xc] sm:$0x3]
        %s1255 = sld [smem:[#allocation3 + $0x15]]
        %v1256 = vstv %s1255
        %v1257 = vmul.f32 %v1256, %v1253
        %v1258 = vmul.f32 %v1256, %v1254
        %v1259 = vadd.f32 %v1209, %v1257
        %v1260 = vadd.f32 %v1210, %v1258
        %s1261 = sld [smem:[#allocation3 + $0x39]]
        %v1262 = vstv %s1261
        %v1263 = vmul.f32 %v1262, %v1253
        %v1264 = vmul.f32 %v1262, %v1254
        %v1265 = vadd.f32 %v1223, %v1263
        %v1266 = vadd.f32 %v1224, %v1264
        %s1267 = sld [smem:[#allocation3 + $0x5d]]
        %v1268 = vstv %s1267
        %v1269 = vmul.f32 %v1268, %v1253
        %v1270 = vmul.f32 %v1268, %v1254
        %v1271 = vadd.f32 %v1237, %v1269
        %v1272 = vadd.f32 %v1238, %v1270
        %s1273 = sld [smem:[#allocation3 + $0x81]]
        %v1274 = vstv %s1273
        %v1275 = vmul.f32 %v1274, %v1253
        %v1276 = vmul.f32 %v1274, %v1254
        %v1277 = vadd.f32 %v1251, %v1275
        %v1278 = vadd.f32 %v1252, %v1276
        %s1279 = sld [smem:[#allocation3 + $0x16]]
        %v1280 = vstv %s1279
        %v1281 = vmul.f32 %v1280, %v1253
        %v1282 = vmul.f32 %v1280, %v1254
        %1285 = vrot.lane.b32.xlu0 %v1281, 127
        %v1286 = vpop.permute.xlu0 %1285
        %1287 = vrot.lane.b32.xlu0 %v1282, 127
        %v1288 = vpop.permute.xlu0 %1287
        %v1291 = vadd.f32 %v1259, %v1286
        %v1292 = vadd.f32 %v1260, %v1288
        %s1293 = sld [smem:[#allocation3 + $0x3a]]
        %v1294 = vstv %s1293
        %v1295 = vmul.f32 %v1294, %v1253
        %v1296 = vmul.f32 %v1294, %v1254
        %1299 = vrot.lane.b32.xlu0 %v1295, 127
        %v1300 = vpop.permute.xlu0 %1299
        %1301 = vrot.lane.b32.xlu0 %v1296, 127
        %v1302 = vpop.permute.xlu0 %1301
        %v1305 = vadd.f32 %v1265, %v1300
        %v1306 = vadd.f32 %v1266, %v1302
        %s1307 = sld [smem:[#allocation3 + $0x5e]]
        %v1308 = vstv %s1307
        %v1309 = vmul.f32 %v1308, %v1253
        %v1310 = vmul.f32 %v1308, %v1254
        %1313 = vrot.lane.b32.xlu0 %v1309, 127
        %v1314 = vpop.permute.xlu0 %1313
        %1315 = vrot.lane.b32.xlu0 %v1310, 127
        %v1316 = vpop.permute.xlu0 %1315
        %v1319 = vadd.f32 %v1271, %v1314
        %v1320 = vadd.f32 %v1272, %v1316
        %s1321 = sld [smem:[#allocation3 + $0x82]]
        %v1322 = vstv %s1321
        %v1323 = vmul.f32 %v1322, %v1253
        %v1324 = vmul.f32 %v1322, %v1254
        %1327 = vrot.lane.b32.xlu0 %v1323, 127
        %v1328 = vpop.permute.xlu0 %1327
        %1329 = vrot.lane.b32.xlu0 %v1324, 127
        %v1330 = vpop.permute.xlu0 %1329
        %v1333 = vadd.f32 %v1277, %v1328
        %v1334 = vadd.f32 %v1278, %v1330
        %s1335 = sld [smem:[#allocation3 + $0x17]]
        %v1336 = vstv %s1335
        %v1337 = vmul.f32 %v1336, %v1253
        %v1338 = vmul.f32 %v1336, %v1254
        %1341 = vrot.lane.b32.xlu0 %v1337, 126
        %v1342 = vpop.permute.xlu0 %1341
        %1343 = vrot.lane.b32.xlu0 %v1338, 126
        %v1344 = vpop.permute.xlu0 %1343
        %v1347 = vadd.f32 %v1291, %v1342
        %v1348 = vadd.f32 %v1292, %v1344
        %s1349 = sld [smem:[#allocation3 + $0x3b]]
        %v1350 = vstv %s1349
        %v1351 = vmul.f32 %v1350, %v1253
        %v1352 = vmul.f32 %v1350, %v1254
        %1355 = vrot.lane.b32.xlu0 %v1351, 126
        %v1356 = vpop.permute.xlu0 %1355
        %1357 = vrot.lane.b32.xlu0 %v1352, 126
        %v1358 = vpop.permute.xlu0 %1357
        %v1361 = vadd.f32 %v1305, %v1356
        %v1362 = vadd.f32 %v1306, %v1358
        %s1363 = sld [smem:[#allocation3 + $0x5f]]
        %v1364 = vstv %s1363
        %v1365 = vmul.f32 %v1364, %v1253
        %v1366 = vmul.f32 %v1364, %v1254
        %1369 = vrot.lane.b32.xlu0 %v1365, 126
        %v1370 = vpop.permute.xlu0 %1369
        %1371 = vrot.lane.b32.xlu0 %v1366, 126
        %v1372 = vpop.permute.xlu0 %1371
        %v1375 = vadd.f32 %v1319, %v1370
        %v1376 = vadd.f32 %v1320, %v1372
        %s1377 = sld [smem:[#allocation3 + $0x83]]
        %v1378 = vstv %s1377
        %v1379 = vmul.f32 %v1378, %v1253
        %v1380 = vmul.f32 %v1378, %v1254
        %1383 = vrot.lane.b32.xlu0 %v1379, 126
        %v1384 = vpop.permute.xlu0 %1383
        %1385 = vrot.lane.b32.xlu0 %v1380, 126
        %v1386 = vpop.permute.xlu0 %1385
        %v1389 = vadd.f32 %v1333, %v1384
        %v1390 = vadd.f32 %v1334, %v1386
        %v1391 = vld [vmem:[%s1114 + $0x5] sm:$0xff]
        %v1392 = vld [vmem:[%s1114 + $0xd] sm:$0x3]
        %s1393 = sld [smem:[#allocation3 + $0x18]]
        %v1394 = vstv %s1393
        %v1395 = vmul.f32 %v1394, %v1391
        %v1396 = vmul.f32 %v1394, %v1392
        %v1397 = vadd.f32 %v1347, %v1395
        %v1398 = vadd.f32 %v1348, %v1396
        %s1399 = sld [smem:[#allocation3 + $0x3c]]
        %v1400 = vstv %s1399
        %v1401 = vmul.f32 %v1400, %v1391
        %v1402 = vmul.f32 %v1400, %v1392
        %v1403 = vadd.f32 %v1361, %v1401
        %v1404 = vadd.f32 %v1362, %v1402
        %s1405 = sld [smem:[#allocation3 + $0x60]]
        %v1406 = vstv %s1405
        %v1407 = vmul.f32 %v1406, %v1391
        %v1408 = vmul.f32 %v1406, %v1392
        %v1409 = vadd.f32 %v1375, %v1407
        %v1410 = vadd.f32 %v1376, %v1408
        %s1411 = sld [smem:[#allocation3 + $0x84]]
        %v1412 = vstv %s1411
        %v1413 = vmul.f32 %v1412, %v1391
        %v1414 = vmul.f32 %v1412, %v1392
        %v1415 = vadd.f32 %v1389, %v1413
        %v1416 = vadd.f32 %v1390, %v1414
        %s1417 = sld [smem:[#allocation3 + $0x19]]
        %v1418 = vstv %s1417
        %v1419 = vmul.f32 %v1418, %v1391
        %v1420 = vmul.f32 %v1418, %v1392
        %1423 = vrot.lane.b32.xlu0 %v1419, 127
        %v1424 = vpop.permute.xlu0 %1423
        %1425 = vrot.lane.b32.xlu0 %v1420, 127
        %v1426 = vpop.permute.xlu0 %1425
        %v1429 = vadd.f32 %v1397, %v1424
        %v1430 = vadd.f32 %v1398, %v1426
        %s1431 = sld [smem:[#allocation3 + $0x3d]]
        %v1432 = vstv %s1431
        %v1433 = vmul.f32 %v1432, %v1391
        %v1434 = vmul.f32 %v1432, %v1392
        %1437 = vrot.lane.b32.xlu0 %v1433, 127
        %v1438 = vpop.permute.xlu0 %1437
        %1439 = vrot.lane.b32.xlu0 %v1434, 127
        %v1440 = vpop.permute.xlu0 %1439
        %v1443 = vadd.f32 %v1403, %v1438
        %v1444 = vadd.f32 %v1404, %v1440
        %s1445 = sld [smem:[#allocation3 + $0x61]]
        %v1446 = vstv %s1445
        %v1447 = vmul.f32 %v1446, %v1391
        %v1448 = vmul.f32 %v1446, %v1392
        %1451 = vrot.lane.b32.xlu0 %v1447, 127
        %v1452 = vpop.permute.xlu0 %1451
        %1453 = vrot.lane.b32.xlu0 %v1448, 127
        %v1454 = vpop.permute.xlu0 %1453
        %v1457 = vadd.f32 %v1409, %v1452
        %v1458 = vadd.f32 %v1410, %v1454
        %s1459 = sld [smem:[#allocation3 + $0x85]]
        %v1460 = vstv %s1459
        %v1461 = vmul.f32 %v1460, %v1391
        %v1462 = vmul.f32 %v1460, %v1392
        %1465 = vrot.lane.b32.xlu0 %v1461, 127
        %v1466 = vpop.permute.xlu0 %1465
        %1467 = vrot.lane.b32.xlu0 %v1462, 127
        %v1468 = vpop.permute.xlu0 %1467
        %v1471 = vadd.f32 %v1415, %v1466
        %v1472 = vadd.f32 %v1416, %v1468
        %s1473 = sld [smem:[#allocation3 + $0x1a]]
        %v1474 = vstv %s1473
        %v1475 = vmul.f32 %v1474, %v1391
        %v1476 = vmul.f32 %v1474, %v1392
        %1479 = vrot.lane.b32.xlu0 %v1475, 126
        %v1480 = vpop.permute.xlu0 %1479
        %1481 = vrot.lane.b32.xlu0 %v1476, 126
        %v1482 = vpop.permute.xlu0 %1481
        %v1485 = vadd.f32 %v1429, %v1480
        %v1486 = vadd.f32 %v1430, %v1482
        %s1487 = sld [smem:[#allocation3 + $0x3e]]
        %v1488 = vstv %s1487
        %v1489 = vmul.f32 %v1488, %v1391
        %v1490 = vmul.f32 %v1488, %v1392
        %1493 = vrot.lane.b32.xlu0 %v1489, 126
        %v1494 = vpop.permute.xlu0 %1493
        %1495 = vrot.lane.b32.xlu0 %v1490, 126
        %v1496 = vpop.permute.xlu0 %1495
        %v1499 = vadd.f32 %v1443, %v1494
        %v1500 = vadd.f32 %v1444, %v1496
        %s1501 = sld [smem:[#allocation3 + $0x62]]
        %v1502 = vstv %s1501
        %v1503 = vmul.f32 %v1502, %v1391
        %v1504 = vmul.f32 %v1502, %v1392
        %1507 = vrot.lane.b32.xlu0 %v1503, 126
        %v1508 = vpop.permute.xlu0 %1507
        %1509 = vrot.lane.b32.xlu0 %v1504, 126
        %v1510 = vpop.permute.xlu0 %1509
        %v1513 = vadd.f32 %v1457, %v1508
        %v1514 = vadd.f32 %v1458, %v1510
        %s1515 = sld [smem:[#allocation3 + $0x86]]
        %v1516 = vstv %s1515
        %v1517 = vmul.f32 %v1516, %v1391
        %v1518 = vmul.f32 %v1516, %v1392
        %1521 = vrot.lane.b32.xlu0 %v1517, 126
        %v1522 = vpop.permute.xlu0 %1521
        %1523 = vrot.lane.b32.xlu0 %v1518, 126
        %v1524 = vpop.permute.xlu0 %1523
        %v1527 = vadd.f32 %v1471, %v1522
        %v1528 = vadd.f32 %v1472, %v1524
        %s1529 = scalar_lea.vmem [#allocation2], 72
        %v1530 = vld [vmem:[%s1529 + $0x3] sm:$0xff]
        %v1531 = vld [vmem:[%s1529 + $0xb] sm:$0x3]
        %s1532 = sld [smem:[#allocation3 + $0x1b]]
        %v1533 = vstv %s1532
        %v1534 = vmul.f32 %v1533, %v1530
        %v1535 = vmul.f32 %v1533, %v1531
        %v1536 = vadd.f32 %v1485, %v1534
        %v1537 = vadd.f32 %v1486, %v1535
        %s1538 = sld [smem:[#allocation3 + $0x3f]]
        %v1539 = vstv %s1538
        %v1540 = vmul.f32 %v1539, %v1530
        %v1541 = vmul.f32 %v1539, %v1531
        %v1542 = vadd.f32 %v1499, %v1540
        %v1543 = vadd.f32 %v1500, %v1541
        %s1544 = sld [smem:[#allocation3 + $0x63]]
        %v1545 = vstv %s1544
        %v1546 = vmul.f32 %v1545, %v1530
        %v1547 = vmul.f32 %v1545, %v1531
        %v1548 = vadd.f32 %v1513, %v1546
        %v1549 = vadd.f32 %v1514, %v1547
        %s1550 = sld [smem:[#allocation3 + $0x87]]
        %v1551 = vstv %s1550
        %v1552 = vmul.f32 %v1551, %v1530
        %v1553 = vmul.f32 %v1551, %v1531
        %v1554 = vadd.f32 %v1527, %v1552
        %v1555 = vadd.f32 %v1528, %v1553
        %s1556 = sld [smem:[#allocation3 + $0x1c]]
        %v1557 = vstv %s1556
        %v1558 = vmul.f32 %v1557, %v1530
        %v1559 = vmul.f32 %v1557, %v1531
        %1562 = vrot.lane.b32.xlu0 %v1558, 127
        %v1563 = vpop.permute.xlu0 %1562
        %1564 = vrot.lane.b32.xlu0 %v1559, 127
        %v1565 = vpop.permute.xlu0 %1564
        %v1568 = vadd.f32 %v1536, %v1563
        %v1569 = vadd.f32 %v1537, %v1565
        %s1570 = sld [smem:[#allocation3 + $0x40]]
        %v1571 = vstv %s1570
        %v1572 = vmul.f32 %v1571, %v1530
        %v1573 = vmul.f32 %v1571, %v1531
        %1576 = vrot.lane.b32.xlu0 %v1572, 127
        %v1577 = vpop.permute.xlu0 %1576
        %1578 = vrot.lane.b32.xlu0 %v1573, 127
        %v1579 = vpop.permute.xlu0 %1578
        %v1582 = vadd.f32 %v1542, %v1577
        %v1583 = vadd.f32 %v1543, %v1579
        %s1584 = sld [smem:[#allocation3 + $0x64]]
        %v1585 = vstv %s1584
        %v1586 = vmul.f32 %v1585, %v1530
        %v1587 = vmul.f32 %v1585, %v1531
        %1590 = vrot.lane.b32.xlu0 %v1586, 127
        %v1591 = vpop.permute.xlu0 %1590
        %1592 = vrot.lane.b32.xlu0 %v1587, 127
        %v1593 = vpop.permute.xlu0 %1592
        %v1596 = vadd.f32 %v1548, %v1591
        %v1597 = vadd.f32 %v1549, %v1593
        %s1598 = sld [smem:[#allocation3 + $0x88]]
        %v1599 = vstv %s1598
        %v1600 = vmul.f32 %v1599, %v1530
        %v1601 = vmul.f32 %v1599, %v1531
        %1604 = vrot.lane.b32.xlu0 %v1600, 127
        %v1605 = vpop.permute.xlu0 %1604
        %1606 = vrot.lane.b32.xlu0 %v1601, 127
        %v1607 = vpop.permute.xlu0 %1606
        %v1610 = vadd.f32 %v1554, %v1605
        %v1611 = vadd.f32 %v1555, %v1607
        %s1612 = sld [smem:[#allocation3 + $0x1d]]
        %v1613 = vstv %s1612
        %v1614 = vmul.f32 %v1613, %v1530
        %v1615 = vmul.f32 %v1613, %v1531
        %1618 = vrot.lane.b32.xlu0 %v1614, 126
        %v1619 = vpop.permute.xlu0 %1618
        %1620 = vrot.lane.b32.xlu0 %v1615, 126
        %v1621 = vpop.permute.xlu0 %1620
        %v1624 = vadd.f32 %v1568, %v1619
        %v1625 = vadd.f32 %v1569, %v1621
        %s1626 = sld [smem:[#allocation3 + $0x41]]
        %v1627 = vstv %s1626
        %v1628 = vmul.f32 %v1627, %v1530
        %v1629 = vmul.f32 %v1627, %v1531
        %1632 = vrot.lane.b32.xlu0 %v1628, 126
        %v1633 = vpop.permute.xlu0 %1632
        %1634 = vrot.lane.b32.xlu0 %v1629, 126
        %v1635 = vpop.permute.xlu0 %1634
        %v1638 = vadd.f32 %v1582, %v1633
        %v1639 = vadd.f32 %v1583, %v1635
        %s1640 = sld [smem:[#allocation3 + $0x65]]
        %v1641 = vstv %s1640
        %v1642 = vmul.f32 %v1641, %v1530
        %v1643 = vmul.f32 %v1641, %v1531
        %1646 = vrot.lane.b32.xlu0 %v1642, 126
        %v1647 = vpop.permute.xlu0 %1646
        %1648 = vrot.lane.b32.xlu0 %v1643, 126
        %v1649 = vpop.permute.xlu0 %1648
        %v1652 = vadd.f32 %v1596, %v1647
        %v1653 = vadd.f32 %v1597, %v1649
        %s1654 = sld [smem:[#allocation3 + $0x89]]
        %v1655 = vstv %s1654
        %v1656 = vmul.f32 %v1655, %v1530
        %v1657 = vmul.f32 %v1655, %v1531
        %1660 = vrot.lane.b32.xlu0 %v1656, 126
        %v1661 = vpop.permute.xlu0 %1660
        %1662 = vrot.lane.b32.xlu0 %v1657, 126
        %v1663 = vpop.permute.xlu0 %1662
        %v1666 = vadd.f32 %v1610, %v1661
        %v1667 = vadd.f32 %v1611, %v1663
        %v1668 = vld [vmem:[%s1529 + $0x4] sm:$0xff]
        %v1669 = vld [vmem:[%s1529 + $0xc] sm:$0x3]
        %s1670 = sld [smem:[#allocation3 + $0x1e]]
        %v1671 = vstv %s1670
        %v1672 = vmul.f32 %v1671, %v1668
        %v1673 = vmul.f32 %v1671, %v1669
        %v1674 = vadd.f32 %v1624, %v1672
        %v1675 = vadd.f32 %v1625, %v1673
        %s1676 = sld [smem:[#allocation3 + $0x42]]
        %v1677 = vstv %s1676
        %v1678 = vmul.f32 %v1677, %v1668
        %v1679 = vmul.f32 %v1677, %v1669
        %v1680 = vadd.f32 %v1638, %v1678
        %v1681 = vadd.f32 %v1639, %v1679
        %s1682 = sld [smem:[#allocation3 + $0x66]]
        %v1683 = vstv %s1682
        %v1684 = vmul.f32 %v1683, %v1668
        %v1685 = vmul.f32 %v1683, %v1669
        %v1686 = vadd.f32 %v1652, %v1684
        %v1687 = vadd.f32 %v1653, %v1685
        %s1688 = sld [smem:[#allocation3 + $0x8a]]
        %v1689 = vstv %s1688
        %v1690 = vmul.f32 %v1689, %v1668
        %v1691 = vmul.f32 %v1689, %v1669
        %v1692 = vadd.f32 %v1666, %v1690
        %v1693 = vadd.f32 %v1667, %v1691
        %s1694 = sld [smem:[#allocation3 + $0x1f]]
        %v1695 = vstv %s1694
        %v1696 = vmul.f32 %v1695, %v1668
        %v1697 = vmul.f32 %v1695, %v1669
        %1700 = vrot.lane.b32.xlu0 %v1696, 127
        %v1701 = vpop.permute.xlu0 %1700
        %1702 = vrot.lane.b32.xlu0 %v1697, 127
        %v1703 = vpop.permute.xlu0 %1702
        %v1706 = vadd.f32 %v1674, %v1701
        %v1707 = vadd.f32 %v1675, %v1703
        %s1708 = sld [smem:[#allocation3 + $0x43]]
        %v1709 = vstv %s1708
        %v1710 = vmul.f32 %v1709, %v1668
        %v1711 = vmul.f32 %v1709, %v1669
        %1714 = vrot.lane.b32.xlu0 %v1710, 127
        %v1715 = vpop.permute.xlu0 %1714
        %1716 = vrot.lane.b32.xlu0 %v1711, 127
        %v1717 = vpop.permute.xlu0 %1716
        %v1720 = vadd.f32 %v1680, %v1715
        %v1721 = vadd.f32 %v1681, %v1717
        %s1722 = sld [smem:[#allocation3 + $0x67]]
        %v1723 = vstv %s1722
        %v1724 = vmul.f32 %v1723, %v1668
        %v1725 = vmul.f32 %v1723, %v1669
        %1728 = vrot.lane.b32.xlu0 %v1724, 127
        %v1729 = vpop.permute.xlu0 %1728
        %1730 = vrot.lane.b32.xlu0 %v1725, 127
        %v1731 = vpop.permute.xlu0 %1730
        %v1734 = vadd.f32 %v1686, %v1729
        %v1735 = vadd.f32 %v1687, %v1731
        %s1736 = sld [smem:[#allocation3 + $0x8b]]
        %v1737 = vstv %s1736
        %v1738 = vmul.f32 %v1737, %v1668
        %v1739 = vmul.f32 %v1737, %v1669
        %1742 = vrot.lane.b32.xlu0 %v1738, 127
        %v1743 = vpop.permute.xlu0 %1742
        %1744 = vrot.lane.b32.xlu0 %v1739, 127
        %v1745 = vpop.permute.xlu0 %1744
        %v1748 = vadd.f32 %v1692, %v1743
        %v1749 = vadd.f32 %v1693, %v1745
        %s1750 = sld [smem:[#allocation3 + $0x20]]
        %v1751 = vstv %s1750
        %v1752 = vmul.f32 %v1751, %v1668
        %v1753 = vmul.f32 %v1751, %v1669
        %1756 = vrot.lane.b32.xlu0 %v1752, 126
        %v1757 = vpop.permute.xlu0 %1756
        %1758 = vrot.lane.b32.xlu0 %v1753, 126
        %v1759 = vpop.permute.xlu0 %1758
        %v1762 = vadd.f32 %v1706, %v1757
        %v1763 = vadd.f32 %v1707, %v1759
        %s1764 = sld [smem:[#allocation3 + $0x44]]
        %v1765 = vstv %s1764
        %v1766 = vmul.f32 %v1765, %v1668
        %v1767 = vmul.f32 %v1765, %v1669
        %1770 = vrot.lane.b32.xlu0 %v1766, 126
        %v1771 = vpop.permute.xlu0 %1770
        %1772 = vrot.lane.b32.xlu0 %v1767, 126
        %v1773 = vpop.permute.xlu0 %1772
        %v1776 = vadd.f32 %v1720, %v1771
        %v1777 = vadd.f32 %v1721, %v1773
        %s1778 = sld [smem:[#allocation3 + $0x68]]
        %v1779 = vstv %s1778
        %v1780 = vmul.f32 %v1779, %v1668
        %v1781 = vmul.f32 %v1779, %v1669
        %1784 = vrot.lane.b32.xlu0 %v1780, 126
        %v1785 = vpop.permute.xlu0 %1784
        %1786 = vrot.lane.b32.xlu0 %v1781, 126
        %v1787 = vpop.permute.xlu0 %1786
        %v1790 = vadd.f32 %v1734, %v1785
        %v1791 = vadd.f32 %v1735, %v1787
        %s1792 = sld [smem:[#allocation3 + $0x8c]]
        %v1793 = vstv %s1792
        %v1794 = vmul.f32 %v1793, %v1668
        %v1795 = vmul.f32 %v1793, %v1669
        %1798 = vrot.lane.b32.xlu0 %v1794, 126
        %v1799 = vpop.permute.xlu0 %1798
        %1800 = vrot.lane.b32.xlu0 %v1795, 126
        %v1801 = vpop.permute.xlu0 %1800
        %v1804 = vadd.f32 %v1748, %v1799
        %v1805 = vadd.f32 %v1749, %v1801
        %v1806 = vld [vmem:[%s1529 + $0x5] sm:$0xff]
        %v1807 = vld [vmem:[%s1529 + $0xd] sm:$0x3]
        %s1808 = sld [smem:[#allocation3 + $0x21]]
        %v1809 = vstv %s1808
        %v1810 = vmul.f32 %v1809, %v1806
        %v1811 = vmul.f32 %v1809, %v1807
        %v1812 = vadd.f32 %v1762, %v1810
        %v1813 = vadd.f32 %v1763, %v1811
        %s1814 = sld [smem:[#allocation3 + $0x45]]
        %v1815 = vstv %s1814
        %v1816 = vmul.f32 %v1815, %v1806
        %v1817 = vmul.f32 %v1815, %v1807
        %v1818 = vadd.f32 %v1776, %v1816
        %v1819 = vadd.f32 %v1777, %v1817
        %s1820 = sld [smem:[#allocation3 + $0x69]]
        %v1821 = vstv %s1820
        %v1822 = vmul.f32 %v1821, %v1806
        %v1823 = vmul.f32 %v1821, %v1807
        %v1824 = vadd.f32 %v1790, %v1822
        %v1825 = vadd.f32 %v1791, %v1823
        %s1826 = sld [smem:[#allocation3 + $0x8d]]
        %v1827 = vstv %s1826
        %v1828 = vmul.f32 %v1827, %v1806
        %v1829 = vmul.f32 %v1827, %v1807
        %v1830 = vadd.f32 %v1804, %v1828
        %v1831 = vadd.f32 %v1805, %v1829
        %s1832 = sld [smem:[#allocation3 + $0x22]]
        %v1833 = vstv %s1832
        %v1834 = vmul.f32 %v1833, %v1806
        %v1835 = vmul.f32 %v1833, %v1807
        %1838 = vrot.lane.b32.xlu0 %v1834, 127
        %v1839 = vpop.permute.xlu0 %1838
        %1840 = vrot.lane.b32.xlu0 %v1835, 127
        %v1841 = vpop.permute.xlu0 %1840
        %v1844 = vadd.f32 %v1812, %v1839
        %v1845 = vadd.f32 %v1813, %v1841
        %s1846 = sld [smem:[#allocation3 + $0x46]]
        %v1847 = vstv %s1846
        %v1848 = vmul.f32 %v1847, %v1806
        %v1849 = vmul.f32 %v1847, %v1807
        %1852 = vrot.lane.b32.xlu0 %v1848, 127
        %v1853 = vpop.permute.xlu0 %1852
        %1854 = vrot.lane.b32.xlu0 %v1849, 127
        %v1855 = vpop.permute.xlu0 %1854
        %v1858 = vadd.f32 %v1818, %v1853
        %v1859 = vadd.f32 %v1819, %v1855
        %s1860 = sld [smem:[#allocation3 + $0x6a]]
        %v1861 = vstv %s1860
        %v1862 = vmul.f32 %v1861, %v1806
        %v1863 = vmul.f32 %v1861, %v1807
        %1866 = vrot.lane.b32.xlu0 %v1862, 127
        %v1867 = vpop.permute.xlu0 %1866
        %1868 = vrot.lane.b32.xlu0 %v1863, 127
        %v1869 = vpop.permute.xlu0 %1868
        %v1872 = vadd.f32 %v1824, %v1867
        %v1873 = vadd.f32 %v1825, %v1869
        %s1874 = sld [smem:[#allocation3 + $0x8e]]
        %v1875 = vstv %s1874
        %v1876 = vmul.f32 %v1875, %v1806
        %v1877 = vmul.f32 %v1875, %v1807
        %1880 = vrot.lane.b32.xlu0 %v1876, 127
        %v1881 = vpop.permute.xlu0 %1880
        %1882 = vrot.lane.b32.xlu0 %v1877, 127
        %v1883 = vpop.permute.xlu0 %1882
        %v1886 = vadd.f32 %v1830, %v1881
        %v1887 = vadd.f32 %v1831, %v1883
        %s1888 = sld [smem:[#allocation3 + $0x23]]
        %v1889 = vstv %s1888
        %v1890 = vmul.f32 %v1889, %v1806
        %v1891 = vmul.f32 %v1889, %v1807
        %1894 = vrot.lane.b32.xlu0 %v1890, 126
        %v1895 = vpop.permute.xlu0 %1894
        %1896 = vrot.lane.b32.xlu0 %v1891, 126
        %v1897 = vpop.permute.xlu0 %1896
        %v1900 = vadd.f32 %v1844, %v1895
        %v1901 = vadd.f32 %v1845, %v1897
        %s1902 = sld [smem:[#allocation3 + $0x47]]
        %v1903 = vstv %s1902
        %v1904 = vmul.f32 %v1903, %v1806
        %v1905 = vmul.f32 %v1903, %v1807
        %1908 = vrot.lane.b32.xlu0 %v1904, 126
        %v1909 = vpop.permute.xlu0 %1908
        %1910 = vrot.lane.b32.xlu0 %v1905, 126
        %v1911 = vpop.permute.xlu0 %1910
        %v1914 = vadd.f32 %v1858, %v1909
        %v1915 = vadd.f32 %v1859, %v1911
        %s1916 = sld [smem:[#allocation3 + $0x6b]]
        %v1917 = vstv %s1916
        %v1918 = vmul.f32 %v1917, %v1806
        %v1919 = vmul.f32 %v1917, %v1807
        %1922 = vrot.lane.b32.xlu0 %v1918, 126
        %v1923 = vpop.permute.xlu0 %1922
        %1924 = vrot.lane.b32.xlu0 %v1919, 126
        %v1925 = vpop.permute.xlu0 %1924
        %v1928 = vadd.f32 %v1872, %v1923
        %v1929 = vadd.f32 %v1873, %v1925
        %s1930 = sld [smem:[#allocation3 + $0x8f]]
        %v1931 = vstv %s1930
        %v1932 = vmul.f32 %v1931, %v1806
        %v1933 = vmul.f32 %v1931, %v1807
        %1936 = vrot.lane.b32.xlu0 %v1932, 126
        %v1937 = vpop.permute.xlu0 %1936
        %1938 = vrot.lane.b32.xlu0 %v1933, 126
        %v1939 = vpop.permute.xlu0 %1938
        %v1942 = vadd.f32 %v1886, %v1937
        %v1943 = vadd.f32 %v1887, %v1939
        %1946 = vrot.lane.b32.xlu0 %v1900, 126
        %v1947 = vpop.permute.xlu0 %1946
        %1948 = vrot.lane.b32.xlu0 %v1901, 126
        %v1949 = vpop.permute.xlu0 %1948
        %vm1952 = vcmask 97280
        %1953 = vst.msk [vmem:[%s197] sm:$0xff] %vm1952, %v1947
        %vm1954 = vcmask 91136
        %1955 = vst.msk [vmem:[%s197 + $0x8] sm:$0x3] %vm1954, %v1949
        %1958 = vrot.lane.b32.xlu0 %v1914, 126
        %v1959 = vpop.permute.xlu0 %1958
        %1960 = vrot.lane.b32.xlu0 %v1915, 126
        %v1961 = vpop.permute.xlu0 %1960
        %s1964 = scalar_lea.vmem %s197, 16
        %1965 = vst.msk [vmem:[%s1964] sm:$0xff] %vm1952, %v1959
        %1966 = vst.msk [vmem:[%s1964 + $0x8] sm:$0x3] %vm1954, %v1961
        %1969 = vrot.lane.b32.xlu0 %v1928, 126
        %v1970 = vpop.permute.xlu0 %1969
        %1971 = vrot.lane.b32.xlu0 %v1929, 126
        %v1972 = vpop.permute.xlu0 %1971
        %s1975 = scalar_lea.vmem %s197, 32
        %1976 = vst.msk [vmem:[%s1975] sm:$0xff] %vm1952, %v1970
        %1977 = vst.msk [vmem:[%s1975 + $0x8] sm:$0x3] %vm1954, %v1972
        %1980 = vrot.lane.b32.xlu0 %v1942, 126
        %v1981 = vpop.permute.xlu0 %1980
        %1982 = vrot.lane.b32.xlu0 %v1943, 126
        %v1983 = vpop.permute.xlu0 %1982
        %s1986 = scalar_lea.vmem %s197, 48
        %1987 = vst.msk [vmem:[%s1986] sm:$0xff] %vm1952, %v1981
        %1988 = vst.msk [vmem:[%s1986 + $0x8] sm:$0x3] %vm1954, %v1983
        %p1989 = scmp.lt.s32.totalorder %s16, 1
        %s1990 = scalar_select %p1989, %s16, 1
        %s1991 = smul.addr %s1990, 8
        %s1992 = smul.addr %s1991, 8
        %s1993 = scalar_lea.vmem %s3, %s1992
        // Predicated region
        $region41: #{tpu_custom_call.1} parent=31 // pred_check
          %p1994 = pneg %p102
        $region42: #{tpu_custom_call.1} parent=31 // pred_check_branch
          %1996 = sbr.rel (%p1994) target = $region44
        $region43: #{tpu_custom_call.1} parent=31 // pred_region
          _
        $region44: #{tpu_custom_call.1} parent=31 // pred_fallthru
          _
      $region32: #{tpu_custom_call.1} parent=5 // pred_fallthru
        _
      %p1997 = scmp.le.s32.totalorder 2, %s11
      // Predicated region
      $region45: #{tpu_custom_call.1} parent=5 // pred_check
        %p1998 = pneg %p1997
      $region46: #{tpu_custom_call.1} parent=5 // pred_check_branch
        %2000 = sbr.rel (%p1998) target = $region48
      $region47: #{tpu_custom_call.1} parent=5 // pred_region
        %s2001 = ssub.s32 %s11, 2
        // Predicated region
        $region49: #{tpu_custom_call.1} parent=47 // pred_check
          %p2002 = pneg %p108
        $region50: #{tpu_custom_call.1} parent=47 // pred_check_branch
          %2004 = sbr.rel (%p2002) target = $region52
        $region51: #{tpu_custom_call.1} parent=47 // pred_region
          %p2005 = scmp.lt.s32.totalorder %s17, 1
          %s2006 = scalar_select %p2005, %s17, 1
          %s2007 = smul.addr %s2006, 8
          %s2008 = smul.addr %s2007, 8
          %s2009 = scalar_lea.vmem %s3, %s2008
        $region52: #{tpu_custom_call.1} parent=47 // pred_fallthru
          _
      $region48: #{tpu_custom_call.1} parent=5 // pred_fallthru
        _
    $region6: #{tpu_custom_call.1} parent=1 // loop_footer
      %s15 = sadd.s32 1, %s11
    $region7: #{tpu_custom_call.1} parent=1 // loop_footer_branch
      %10 = sbr.rel target = $region3
    $region8: #{tpu_custom_call.1} parent=1 // loop_exit
      _
    %2010 = vsyncpa [#allocation4], 1
    %s2011 = scalar_lea.sflag [#allocation4], 1
    %2012 = vsyncpa %s2011, 1
    %2013 = vsyncpa [#allocation6], 1

</llo_original>
